<compile_context>
chip_gen: v7x
topology: tpu7x:2x2x1
jax: 0.10.0
libtpu: 0.0.40
codegen_flags: <defaults>
</compile_context>

<pallas_src>
import functools

import jax
import jax.numpy as jnp
from jax import lax
from jax.experimental import pallas as pl
from jax.experimental.pallas import tpu as pltpu


def _round_up(x, m):
    return (x + m - 1) // m * m


# ---------------------------------------------------------------------------
# Path A (default): parallel feature-slab grid.  One grid step = full-batch
# matmul for a 128-wide feature slab + BatchNorm(train) + ReLU for that slab.
# ---------------------------------------------------------------------------
def _fslab_kernel(pooled_ref, w_ref, gamma_ref, beta_ref, out_ref, *, batch, n_pad):
    # pooled_ref: (B_pad, C) bf16 (grid-invariant)   w_ref: (C, tile_f) bf16
    # gamma_ref/beta_ref: (1, tile_f) f32            out_ref: (B_pad, tile_f) f32
    z = jnp.dot(pooled_ref[...], w_ref[...], preferred_element_type=jnp.float32)

    # Training-mode BatchNorm1d statistics over the real batch rows only.
    # Padded pooled rows are exactly zero -> they contribute 0 to the sum, and
    # their (0 - mean)^2 contribution to the squared-diff sum is subtracted
    # exactly, so no iota/valid mask is needed.
    inv_b = jnp.float32(1.0 / batch)
    mean = jnp.sum(z, axis=0, keepdims=True) * inv_b
    diff = z - mean
    sq = jnp.sum(diff * diff, axis=0, keepdims=True) - jnp.float32(n_pad) * mean * mean
    var = jnp.maximum(sq * inv_b, 0.0)

    scale = lax.rsqrt(var + jnp.float32(1e-5)) * gamma_ref[...]
    out_ref[...] = jnp.maximum(diff * scale + beta_ref[...], 0.0)


# ---------------------------------------------------------------------------
# Path B (large batch): batch-tiled grid with a resident output block.  Each
# step writes its pre-BN tile and accumulates per-feature sum / sum-of-squares
# into a (2, F) f32 VMEM scratch; the last step does one normalize+ReLU pass.
# ---------------------------------------------------------------------------
def _batch_tiled_kernel(pooled_ref, w_ref, gamma_ref, beta_ref, out_ref, stats_ref,
                        *, batch, tile_b):
    i = pl.program_id(0)

    @pl.when(i == 0)
    def _():
        stats_ref[...] = jnp.zeros_like(stats_ref)

    # Linear(2048, 256): bf16 x bf16 -> f32 on the MXU (bias cancels under BN).
    z = jnp.dot(pooled_ref[...], w_ref[...], preferred_element_type=jnp.float32)

    start = pl.multiple_of(i * tile_b, tile_b)
    out_ref[pl.ds(start, tile_b), :] = z

    # Padded pooled rows are exactly zero -> zero contribution to both sums.
    stats_ref[0:1, :] = stats_ref[0:1, :] + jnp.sum(z, axis=0, keepdims=True)
    stats_ref[1:2, :] = stats_ref[1:2, :] + jnp.sum(z * z, axis=0, keepdims=True)

    @pl.when(i == pl.num_programs(0) - 1)
    def _():
        inv_b = jnp.float32(1.0 / batch)
        mean = stats_ref[0:1, :] * inv_b
        # E[z^2] - mean^2 in f32; cancellation is negligible for BN-scale inputs.
        var = jnp.maximum(stats_ref[1:2, :] * inv_b - mean * mean, 0.0)
        scale = lax.rsqrt(var + jnp.float32(1e-5)) * gamma_ref[...]
        shift = beta_ref[...] - mean * scale
        out_ref[...] = jnp.maximum(out_ref[...] * scale + shift, 0.0)


def generator_bottleneck_forward(backbone_feature_nchw, w, b, gamma, beta, *,
                                 tile_f=128, tile_b=256,
                                 feature_parallel_max_batch=2048):
    """avgpool + (Linear(2048,256) -> BatchNorm1d(train) -> ReLU) of Generator.

    backbone_feature_nchw: (B, C=2048, H, W) backbone output.
    w: (C, F) Linear weight (transposed PyTorch layout).  b: (F,) Linear bias (unused:
    it cancels under batch-stat BatchNorm; kept for interface parity).
    gamma, beta: (F,) BatchNorm1d affine parameters.
    Returns (B, F) float32.
    """
    del b  # Linear bias cancels exactly under training-mode BatchNorm.
    B, C, H, W = backbone_feature_nchw.shape
    F = w.shape[1]

    # Global average pool directly on NCHW with f32 accumulation fused into the
    # reduce: one HBM pass over the feature map, no materialized upcast copy.
    pooled = jnp.mean(backbone_feature_nchw, axis=(2, 3), dtype=jnp.float32)  # (B, C)

    # bf16 operands for the MXU (f32 accumulate): halves pooled + weight HBM bytes.
    pooled = pooled.astype(jnp.bfloat16)
    w_bf16 = w.astype(jnp.bfloat16)
    gamma2 = gamma.reshape(1, F).astype(jnp.float32)
    beta2 = beta.reshape(1, F).astype(jnp.float32)

    if B <= feature_parallel_max_batch:
        # ---- Path A: parallel feature-slab grid, whole batch per step. ----
        B_pad = _round_up(B, 8)
        if B_pad != B:
            pooled = jnp.pad(pooled, ((0, B_pad - B), (0, 0)))
        tf = tile_f if F % tile_f == 0 else F

        kernel = functools.partial(_fslab_kernel, batch=B, n_pad=B_pad - B)
        out = pl.pallas_call(
            kernel,
            out_shape=jax.ShapeDtypeStruct((B_pad, F), jnp.float32),
            grid_spec=pltpu.PrefetchScalarGridSpec(
                num_scalar_prefetch=0,
                grid=(F // tf,),
                in_specs=[
                    pl.BlockSpec((B_pad, C), lambda j: (0, 0)),   # pooled, grid-invariant
                    pl.BlockSpec((C, tf), lambda j: (0, j)),      # weight slab
                    pl.BlockSpec((1, tf), lambda j: (0, j)),      # gamma slab
                    pl.BlockSpec((1, tf), lambda j: (0, j)),      # beta slab
                ],
                out_specs=pl.BlockSpec((B_pad, tf), lambda j: (0, j)),  # lane-dense slab
            ),
            compiler_params=pltpu.CompilerParams(
                # Independent feature slabs -> "parallel" (megacore-shardable on v7x).
                dimension_semantics=("parallel",),
                vmem_limit_bytes=48 * 1024 * 1024,
            ),
        )(pooled, w_bf16, gamma2, beta2)
        return out[:B]

    # ---- Path B: batch-tiled grid for large batches (pooled won't fit in one shot). ----
    tb = min(tile_b, _round_up(B, 8))          # 256 fills the 256-row MXU on v6e/v7x
    B_pad = _round_up(B, tb)
    if B_pad != B:
        pooled = jnp.pad(pooled, ((0, B_pad - B), (0, 0)))
    num_tiles = B_pad // tb

    kernel = functools.partial(_batch_tiled_kernel, batch=B, tile_b=tb)
    out = pl.pallas_call(
        kernel,
        out_shape=jax.ShapeDtypeStruct((B_pad, F), jnp.float32),
        grid_spec=pltpu.PrefetchScalarGridSpec(
            num_scalar_prefetch=0,
            grid=(num_tiles,),
            in_specs=[
                pl.BlockSpec((tb, C), lambda i: (i, 0)),     # pooled batch tile
                pl.BlockSpec((C, F), lambda i: (0, 0)),      # weight, resident
                pl.BlockSpec((1, F), lambda i: (0, 0)),      # gamma
                pl.BlockSpec((1, F), lambda i: (0, 0)),      # beta
            ],
            out_specs=pl.BlockSpec((B_pad, F), lambda i: (0, 0)),  # resident output
            scratch_shapes=[pltpu.VMEM((2, F), jnp.float32)],      # [sum; sum of squares]
        ),
        compiler_params=pltpu.CompilerParams(
            # Output block resident / accumulated across batch tiles -> "arbitrary".
            dimension_semantics=("arbitrary",),
            vmem_limit_bytes=48 * 1024 * 1024,
        ),
    )(pooled, w_bf16, gamma2, beta2)
    return out[:B]


def _reference(x_nchw, w, b, gamma, beta):
    # Pure-JAX reference mirroring the kernel numerics (bf16 matmul operands, f32
    # accumulate). The Linear bias is kept here to demonstrate that it cancels under
    # training-mode BatchNorm (the kernel drops it).
    pooled = jnp.mean(x_nchw, axis=(2, 3)).astype(jnp.bfloat16)
    z = jnp.dot(pooled, w.astype(jnp.bfloat16),
                preferred_element_type=jnp.float32) + b
    mean = jnp.mean(z, axis=0, keepdims=True)
    var = jnp.mean((z - mean) ** 2, axis=0, keepdims=True)
    y = (z - mean) * lax.rsqrt(var + 1e-5) * gamma + beta
    return jnp.maximum(y, 0.0)


if __name__ == "__main__":
    key = jax.random.PRNGKey(0)
    k_x, k_w, k_b, k_x2 = jax.random.split(key, 4)

    # Small shapes consistent with the module: 2048-channel backbone feature map,
    # Linear(2048, 256) bottleneck.
    B, C, H, W = 2, 2048, 4, 4
    F = 256

    # Synthetic backbone feature map (stand-in for the ResNet50 output).
    x = jax.random.normal(k_x, (B, C, H, W), dtype=jnp.float32)

    w = jax.random.normal(k_w, (C, F), dtype=jnp.float32) * 0.02   # Linear weight^T
    b = jax.random.normal(k_b, (F,), dtype=jnp.float32) * 0.01     # Linear bias
    gamma = jnp.ones((F,), dtype=jnp.float32)                       # BN weight
    beta = jnp.zeros((F,), dtype=jnp.float32)                       # BN bias

    # Default path (Path A: parallel feature-slab grid).
    out = generator_bottleneck_forward(x, w, b, gamma, beta)
    out = jax.block_until_ready(out)
    ref = _reference(x, w, b, gamma, beta)
    assert out.shape == (B, F)
    err = float(jnp.max(jnp.abs(out - ref)))
    assert jnp.allclose(out, ref, atol=2e-3, rtol=2e-3), f"Path A mismatch: {err}"

    # Also exercise the large-batch fallback (Path B: batch tiles + stats scratch),
    # with a small forced tile so multi-step sum/sumsq accumulation is covered.
    B2 = 20
    x2 = jax.random.normal(k_x2, (B2, C, H, W), dtype=jnp.float32)
    out2 = generator_bottleneck_forward(x2, w, b, gamma, beta,
                                        feature_parallel_max_batch=0, tile_b=8)
    out2 = jax.block_until_ready(out2)
    ref2 = _reference(x2, w, b, gamma, beta)
    assert out2.shape == (B2, F)
    err2 = float(jnp.max(jnp.abs(out2 - ref2)))
    assert jnp.allclose(out2, ref2, atol=2e-3, rtol=2e-3), f"Path B mismatch: {err2}"

    print("KERNEL_OK")
</pallas_src>

<mosaic_0001>
module attributes {stable_mosaic.version = 11 : i64} {
  func.func @_fslab_kernel(%arg0: i32, %arg1: memref<8x2048xbf16, #tpu.memory_space<vmem>>, %arg2: memref<2048x128xbf16, #tpu.memory_space<vmem>>, %arg3: memref<1x128xf32, #tpu.memory_space<vmem>>, %arg4: memref<1x128xf32, #tpu.memory_space<vmem>>, %arg5: memref<8x128xf32, #tpu.memory_space<vmem>>) attributes {dimension_semantics = [#tpu.dimension_semantics<parallel>], iteration_bounds = array<i64: 2>, scalar_prefetch = 0 : i64, scratch_operands = 0 : i64, tpu.core_type = #tpu.core_type<tc>, window_params = [{pipeline_mode = #tpu.pipeline_mode<synchronous>, transform_indices = @transform_0, window_bounds = array<i64: 8, 2048>}, {transform_indices = @transform_1, window_bounds = array<i64: 2048, 128>}, {transform_indices = @transform_2, window_bounds = array<i64: 1, 128>}, {transform_indices = @transform_3, window_bounds = array<i64: 1, 128>}, {transform_indices = @transform_4, window_bounds = array<i64: 8, 128>}]} {
    %c0 = arith.constant 0 : index
    %c0_0 = arith.constant 0 : index
    %0 = vector.load %arg1[%c0, %c0_0] : memref<8x2048xbf16, #tpu.memory_space<vmem>>, vector<8x2048xbf16>
    %c0_1 = arith.constant 0 : index
    %c0_2 = arith.constant 0 : index
    %1 = vector.load %arg2[%c0_1, %c0_2] : memref<2048x128xbf16, #tpu.memory_space<vmem>>, vector<2048x128xbf16>
    %cst = arith.constant dense<0.000000e+00> : vector<8x128xf32>
    %2 = tpu.matmul %0, %1, %cst {dimension_numbers = #tpu.dot_dimension_numbers<[1], [0], [0], [1], [0, 0, 1, 1], [], []>} : vector<8x2048xbf16>, vector<2048x128xbf16>, vector<8x128xf32> -> vector<8x128xf32>
    %cst_3 = arith.constant dense<0.000000e+00> : vector<128xf32>
    %3 = vector.multi_reduction <add>, %2, %cst_3 [0] : vector<8x128xf32> to vector<128xf32>
    %4 = vector.shape_cast %3 : vector<128xf32> to vector<1x128xf32>
    %cst_4 = arith.constant 5.000000e-01 : f32
    %5 = vector.broadcast %cst_4 : f32 to vector<1x128xf32>
    %6 = arith.mulf %4, %5 : vector<1x128xf32>
    %7 = vector.broadcast %6 : vector<1x128xf32> to vector<8x128xf32>
    %8 = arith.subf %2, %7 : vector<8x128xf32>
    %9 = arith.mulf %8, %8 : vector<8x128xf32>
    %cst_5 = arith.constant dense<0.000000e+00> : vector<128xf32>
    %10 = vector.multi_reduction <add>, %9, %cst_5 [0] : vector<8x128xf32> to vector<128xf32>
    %11 = vector.shape_cast %10 : vector<128xf32> to vector<1x128xf32>
    %cst_6 = arith.constant 6.000000e+00 : f32
    %12 = vector.broadcast %cst_6 : f32 to vector<1x128xf32>
    %13 = arith.mulf %12, %6 : vector<1x128xf32>
    %14 = arith.mulf %13, %6 : vector<1x128xf32>
    %15 = arith.subf %11, %14 : vector<1x128xf32>
    %cst_7 = arith.constant 5.000000e-01 : f32
    %16 = vector.broadcast %cst_7 : f32 to vector<1x128xf32>
    %17 = arith.mulf %15, %16 : vector<1x128xf32>
    %cst_8 = arith.constant 0.000000e+00 : f32
    %18 = vector.broadcast %cst_8 : f32 to vector<1x128xf32>
    %19 = arith.maximumf %17, %18 : vector<1x128xf32>
    %cst_9 = arith.constant 9.99999974E-6 : f32
    %20 = vector.broadcast %cst_9 : f32 to vector<1x128xf32>
    %21 = arith.addf %19, %20 : vector<1x128xf32>
    %22 = math.rsqrt %21 : vector<1x128xf32>
    %c0_10 = arith.constant 0 : index
    %c0_11 = arith.constant 0 : index
    %23 = vector.load %arg3[%c0_10, %c0_11] : memref<1x128xf32, #tpu.memory_space<vmem>>, vector<1x128xf32>
    %24 = arith.mulf %22, %23 : vector<1x128xf32>
    %25 = vector.broadcast %24 : vector<1x128xf32> to vector<8x128xf32>
    %26 = arith.mulf %8, %25 : vector<8x128xf32>
    %c0_12 = arith.constant 0 : index
    %c0_13 = arith.constant 0 : index
    %27 = vector.load %arg4[%c0_12, %c0_13] : memref<1x128xf32, #tpu.memory_space<vmem>>, vector<1x128xf32>
    %28 = vector.broadcast %27 : vector<1x128xf32> to vector<8x128xf32>
    %29 = arith.addf %26, %28 : vector<8x128xf32>
    %cst_14 = arith.constant 0.000000e+00 : f32
    %30 = vector.broadcast %cst_14 : f32 to vector<8x128xf32>
    %31 = arith.maximumf %29, %30 : vector<8x128xf32>
    %c0_15 = arith.constant 0 : index
    %c0_16 = arith.constant 0 : index
    %32 = vector.load %arg5[%c0_15, %c0_16] : memref<8x128xf32, #tpu.memory_space<vmem>>, vector<8x128xf32>
    tpu.vector_store %arg5[%c0_15, %c0_16], %31 {strides = array<i32>} : memref<8x128xf32, #tpu.memory_space<vmem>>, vector<8x128xf32>,
    return
  }
  func.func @transform_0(%arg0: i32) -> (i32, i32) {
    %c0_i32 = arith.constant 0 : i32
    %c0_i32_0 = arith.constant 0 : i32
    %c0_i32_1 = arith.constant 0 : i32
    return %c0_i32, %c0_i32_0 : i32, i32
  }
  func.func @transform_1(%arg0: i32) -> (i32, i32) {
    %c0_i32 = arith.constant 0 : i32
    %c0_i32_0 = arith.constant 0 : i32
    return %c0_i32, %arg0 : i32, i32
  }
  func.func @transform_2(%arg0: i32) -> (i32, i32) {
    %c0_i32 = arith.constant 0 : i32
    %c0_i32_0 = arith.constant 0 : i32
    return %c0_i32, %arg0 : i32, i32
  }
  func.func @transform_3(%arg0: i32) -> (i32, i32) {
    %c0_i32 = arith.constant 0 : i32
    %c0_i32_0 = arith.constant 0 : i32
    return %c0_i32, %arg0 : i32, i32
  }
  func.func @transform_4(%arg0: i32) -> (i32, i32) {
    %c0_i32 = arith.constant 0 : i32
    %c0_i32_0 = arith.constant 0 : i32
    return %c0_i32, %arg0 : i32, i32
  }
}

</mosaic_0001>

<llo_original>
// kernel: tpu_custom_call.1
$region0: #{tpu_custom_call.1}
  #allocation0 [shape = 'u32[]', space=smem, size = 0x4, offset = 0x4, fixed_abs, tag = 'smem constant byte address 0x4 - core index']
  #allocation1 [shape = 'u32[144,128]{1,0:T(1,128)}', space=vmem, size = 0x12000, scoped, tag = 'internal scratch']
  %s0 = inlined_call_operand.hbm [shape: bf16[8,2048], index: 0, kind: input, shape index: {}]
  %s1 = inlined_call_operand.hbm [shape: bf16[2048,256], index: 1, kind: input, shape index: {}]
  %s2 = inlined_call_operand.vmem [shape: f32[1,256], index: 2, kind: input, shape index: {}]
  %s3 = inlined_call_operand.vmem [shape: f32[1,256], index: 3, kind: input, shape index: {}]
  %s4 = inlined_call_operand.hbm [shape: f32[8,256], index: 4, kind: output, shape index: {}]
  %s5 = sld [smem:[#allocation0]]
  $region57: #{tpu_custom_call.1} parent=0
    _
  %s7 = ssub.s32 1, %s5
  %s8 = scalar_select 0, %s7, %s5
  $region1: #{tpu_custom_call.1} parent=0
    #allocation2 [shape = 'u8[32768]{0}', space=vmem, size = 0x8000, scoped, tag = 'input window, operand 0, single buffered']
    #allocation3 [shape = 's32[2]{0}', space=sflag, size = 0x8, scoped, tag = 'scoped memory for tpu_custom_call.1']
    #allocation4 [shape = 's32[2]{0}', space=sflag, size = 0x8, scoped, tag = 'scoped memory for tpu_custom_call.1']
    #allocation5 [shape = 'u8[1048576]{0}', space=vmem, size = 0x100000, scoped, tag = 'input window, operand 1']
    #allocation6 [shape = 's32[2]{0}', space=sflag, size = 0x8, scoped, tag = 'scoped memory for tpu_custom_call.1']
    #allocation7 [shape = 'u8[8192]{0}', space=vmem, size = 0x2000, scoped, tag = 'output window, operand 0']
    %9 = vsyncpa [#allocation3], 0
    %10 = vsyncpa [#allocation6], 0
    %s11 = scalar_lea.sflag [#allocation6], 1
    %12 = vsyncpa %s11, 0
    %13 = vsyncpa [#allocation4], 0
    %s14 = scalar_lea.sflag [#allocation4], 1
    %15 = vsyncpa %s14, 0
    loop: start=0, step=1, limit=4
    $region2: #{tpu_custom_call.1} parent=1 // loop_pre_header
      _
    $region3: #{tpu_custom_call.1} parent=1 // loop_header
      %s17 = sphi 0, %s21
      %p18 = scmp.ge.s32.totalorder %s17, 4
      %s25 = sphi 0, %s25
      %s27 = sphi 0, %s25
      %s28 = sphi 0, %s27
      %s42 = sphi 0, %s28
      %s48 = sphi 0, %s50
      %s51 = sphi 0, %s48
      %s52 = sphi 0, %s51
      %s68 = sphi 0, %s52
      %s74 = sphi 0, %s76
      %s77 = sphi 0, %s74
      %s78 = sphi 0, %s77
      %s94 = sphi 0, %s78
      %s100 = sphi 0, %s102
      %s103 = sphi 0, %s100
      %s104 = sphi 0, %s103
      %s120 = sphi 0, %s104
      %s126 = sphi 0, %s128
      %s129 = sphi 0, %s126
      %s130 = sphi 0, %s129
      %s146 = sphi 0, %s130
    $region4: #{tpu_custom_call.1} parent=1 // loop_header_branch
      %20 = sbr.rel (%p18) target = $region8
    $region5: #{tpu_custom_call.1} parent=1 // loop_body
      %s22 = ssub.s32 %s17, 1
      %s23 = ssub.s32 %s17, 2
      %s24 = sadd.s32 %s17, 1
      %s26 = sadd.s32 %s25, 1
      %p29 = scmp.eq.s32.totalorder %s17, 1
      %p30 = scmp.ne.s32.totalorder %s25, %s27
      %p31 = scmp.eq.s32.totalorder %s17, 0
      %p32 = por %p30, %p31
      %p33 = scmp.ne.s32.totalorder %s25, %s27
      %p34 = scmp.eq.s32.totalorder %s22, 1
      %p35 = por %p33, %p34
      %p36 = scmp.ne.s32.totalorder %s27, %s28
      %p37 = scmp.eq.s32.totalorder %s22, 0
      %p38 = por %p36, %p37
      %p39 = scmp.ne.s32.totalorder %s27, %s28
      %p40 = scmp.eq.s32.totalorder %s23, 1
      %p41 = por %p39, %p40
      %p43 = scmp.ne.s32.totalorder %s28, %s42
      %p44 = scmp.eq.s32.totalorder %s23, 0
      %p45 = por %p43, %p44
      %s46 = ssub.s32 %s17, %s24
      %p47 = scmp.eq.s32.totalorder %s46, 0
      %s49 = sadd.s32 %s48, 1
      %s50 = scalar_select %p47, %s48, %s49
      %p53 = pneg %p47
      %p54 = scmp.eq.s32.totalorder %s17, 1
      %p55 = por %p53, %p54
      %p56 = scmp.ne.s32.totalorder %s48, %s51
      %p57 = scmp.eq.s32.totalorder %s17, 0
      %p58 = por %p56, %p57
      %p59 = scmp.ne.s32.totalorder %s48, %s51
      %p60 = scmp.eq.s32.totalorder %s22, 1
      %p61 = por %p59, %p60
      %p62 = scmp.ne.s32.totalorder %s51, %s52
      %p63 = scmp.eq.s32.totalorder %s22, 0
      %p64 = por %p62, %p63
      %p65 = scmp.ne.s32.totalorder %s51, %s52
      %p66 = scmp.eq.s32.totalorder %s23, 1
      %p67 = por %p65, %p66
      %p69 = scmp.ne.s32.totalorder %s52, %s68
      %p70 = scmp.eq.s32.totalorder %s23, 0
      %p71 = por %p69, %p70
      %s72 = ssub.s32 %s17, %s24
      %p73 = scmp.eq.s32.totalorder %s72, 0
      %s75 = sadd.s32 %s74, 1
      %s76 = scalar_select %p73, %s74, %s75
      %p79 = pneg %p73
      %p80 = scmp.eq.s32.totalorder %s17, 1
      %p81 = por %p79, %p80
      %p82 = scmp.ne.s32.totalorder %s74, %s77
      %p83 = scmp.eq.s32.totalorder %s17, 0
      %p84 = por %p82, %p83
      %p85 = scmp.ne.s32.totalorder %s74, %s77
      %p86 = scmp.eq.s32.totalorder %s22, 1
      %p87 = por %p85, %p86
      %p88 = scmp.ne.s32.totalorder %s77, %s78
      %p89 = scmp.eq.s32.totalorder %s22, 0
      %p90 = por %p88, %p89
      %p91 = scmp.ne.s32.totalorder %s77, %s78
      %p92 = scmp.eq.s32.totalorder %s23, 1
      %p93 = por %p91, %p92
      %p95 = scmp.ne.s32.totalorder %s78, %s94
      %p96 = scmp.eq.s32.totalorder %s23, 0
      %p97 = por %p95, %p96
      %s98 = ssub.s32 %s17, %s24
      %p99 = scmp.eq.s32.totalorder %s98, 0
      %s101 = sadd.s32 %s100, 1
      %s102 = scalar_select %p99, %s100, %s101
      %p105 = pneg %p99
      %p106 = scmp.eq.s32.totalorder %s17, 1
      %p107 = por %p105, %p106
      %p108 = scmp.ne.s32.totalorder %s100, %s103
      %p109 = scmp.eq.s32.totalorder %s17, 0
      %p110 = por %p108, %p109
      %p111 = scmp.ne.s32.totalorder %s100, %s103
      %p112 = scmp.eq.s32.totalorder %s22, 1
      %p113 = por %p111, %p112
      %p114 = scmp.ne.s32.totalorder %s103, %s104
      %p115 = scmp.eq.s32.totalorder %s22, 0
      %p116 = por %p114, %p115
      %p117 = scmp.ne.s32.totalorder %s103, %s104
      %p118 = scmp.eq.s32.totalorder %s23, 1
      %p119 = por %p117, %p118
      %p121 = scmp.ne.s32.totalorder %s104, %s120
      %p122 = scmp.eq.s32.totalorder %s23, 0
      %p123 = por %p121, %p122
      %s124 = ssub.s32 %s17, %s24
      %p125 = scmp.eq.s32.totalorder %s124, 0
      %s127 = sadd.s32 %s126, 1
      %s128 = scalar_select %p125, %s126, %s127
      %p131 = pneg %p125
      %p132 = scmp.eq.s32.totalorder %s17, 1
      %p133 = por %p131, %p132
      %p134 = scmp.ne.s32.totalorder %s126, %s129
      %p135 = scmp.eq.s32.totalorder %s17, 0
      %p136 = por %p134, %p135
      %p137 = scmp.ne.s32.totalorder %s126, %s129
      %p138 = scmp.eq.s32.totalorder %s22, 1
      %p139 = por %p137, %p138
      %p140 = scmp.ne.s32.totalorder %s129, %s130
      %p141 = scmp.eq.s32.totalorder %s22, 0
      %p142 = por %p140, %p141
      %p143 = scmp.ne.s32.totalorder %s129, %s130
      %p144 = scmp.eq.s32.totalorder %s23, 1
      %p145 = por %p143, %p144
      %p147 = scmp.ne.s32.totalorder %s130, %s146
      %p148 = scmp.eq.s32.totalorder %s23, 0
      %p149 = por %p147, %p148
      %p150 = scmp.le.s32.totalorder 1, %s17
      %p151 = scmp.lt.s32.totalorder %s17, 3
      %p152 = pnand %p150, %p151
      %p153 = pneg %p152
      // Predicated region
      $region9: #{tpu_custom_call.1} parent=5 // pred_check
        _
      $region10: #{tpu_custom_call.1} parent=5 // pred_check_branch
        %155 = sbr.rel (%p152) target = $region12
      $region11: #{tpu_custom_call.1} parent=5 // pred_region
        %s156 = ssub.s32 %s17, 1
        // Predicated region
        $region13: #{tpu_custom_call.1} parent=11 // pred_check
          %p157 = pneg %p38
        $region14: #{tpu_custom_call.1} parent=11 // pred_check_branch
          %159 = sbr.rel (%p157) target = $region16
        $region15: #{tpu_custom_call.1} parent=11 // pred_region
          %s161 = ssub.s32 1024, 1024
          %162 = vsyncadd [#allocation3], %s161
          %s164 = sshll.u32 [#allocation2], 4
          %s165 = int_to_ptr.vmem [resolvable:$true] %s164
          %167 = dma.hbm_to_vmem [thread:$0]  %s0, 1024, %s165, [#allocation3]
        $region16: #{tpu_custom_call.1} parent=11 // pred_fallthru
          _
      $region12: #{tpu_custom_call.1} parent=5 // pred_fallthru
        _
      %p168 = scmp.lt.s32.totalorder %s17, 2
      // Predicated region
      $region17: #{tpu_custom_call.1} parent=5 // pred_check
        %p169 = pneg %p168
      $region18: #{tpu_custom_call.1} parent=5 // pred_check_branch
        %171 = sbr.rel (%p169) target = $region20
      $region19: #{tpu_custom_call.1} parent=5 // pred_region
        // Predicated region
        $region21: #{tpu_custom_call.1} parent=19 // pred_check
          %p172 = pneg %p58
        $region22: #{tpu_custom_call.1} parent=19 // pred_check_branch
          %174 = sbr.rel (%p172) target = $region24
        $region23: #{tpu_custom_call.1} parent=19 // pred_region
          %s175 = sand.u32 %s48, 1
          %s176 = scalar_lea.sflag [#allocation6], %s175
          %s177 = sand.u32 %s48, 1
          %s178 = smul.addr %s177, 1024
          %s179 = scalar_lea.vmem [#allocation5], %s178
          %s181 = ssub.s32 16384, 16384
          %182 = vsyncadd %s176, %s181
          %s183 = smul.addr %s17, 64
          %s184 = scalar_lea.hbm %s1, %s183
          %s185 = sshll.u32 %s179, 4
          %s186 = int_to_ptr.vmem [resolvable:$true] %s185
          %191 = dma.hbm_to_vmem [thread:$0]  %s184, 16384, %s186, %s176, 128, 64, 4
        $region24: #{tpu_custom_call.1} parent=19 // pred_fallthru
          _
        // Predicated region
        $region25: #{tpu_custom_call.1} parent=19 // pred_check
          %p192 = pneg %p84
        $region26: #{tpu_custom_call.1} parent=19 // pred_check_branch
          %194 = sbr.rel (%p192) target = $region28
        $region27: #{tpu_custom_call.1} parent=19 // pred_region
          %p195 = scmp.lt.s32.totalorder %s17, 1
          %s196 = scalar_select %p195, %s17, 1
          %s197 = scalar_lea.vmem %s2, %s196
        $region28: #{tpu_custom_call.1} parent=19 // pred_fallthru
          _
        // Predicated region
        $region29: #{tpu_custom_call.1} parent=19 // pred_check
          %p198 = pneg %p110
        $region30: #{tpu_custom_call.1} parent=19 // pred_check_branch
          %200 = sbr.rel (%p198) target = $region32
        $region31: #{tpu_custom_call.1} parent=19 // pred_region
          %p201 = scmp.lt.s32.totalorder %s17, 1
          %s202 = scalar_select %p201, %s17, 1
          %s203 = scalar_lea.vmem %s3, %s202
        $region32: #{tpu_custom_call.1} parent=19 // pred_fallthru
          _
      $region20: #{tpu_custom_call.1} parent=5 // pred_fallthru
        _
      %p204 = scmp.le.s32.totalorder 1, %s17
      %p205 = scmp.lt.s32.totalorder %s17, 3
      %p206 = pnand %p204, %p205
      %p207 = pneg %p206
      // Predicated region
      $region33: #{tpu_custom_call.1} parent=5 // pred_check
        _
      $region34: #{tpu_custom_call.1} parent=5 // pred_check_branch
        %209 = sbr.rel (%p206) target = $region36
      $region35: #{tpu_custom_call.1} parent=5 // pred_region
        %s210 = ssub.s32 %s17, 1
        // Predicated region
        $region37: #{tpu_custom_call.1} parent=35 // pred_check
          %p211 = pneg %p38
        $region38: #{tpu_custom_call.1} parent=35 // pred_check_branch
          %213 = sbr.rel (%p211) target = $region40
        $region39: #{tpu_custom_call.1} parent=35 // pred_region
          %214 = dma.done [#allocation3], 1024
        $region40: #{tpu_custom_call.1} parent=35 // pred_fallthru
          _
        %s215 = sand.u32 %s51, 1
        %s216 = scalar_lea.sflag [#allocation6], %s215
        %s217 = sand.u32 %s51, 1
        %s218 = smul.addr %s217, 1024
        %s219 = scalar_lea.vmem [#allocation5], %s218
        // Predicated region
        $region41: #{tpu_custom_call.1} parent=35 // pred_check
          %p220 = pneg %p64
        $region42: #{tpu_custom_call.1} parent=35 // pred_check_branch
          %222 = sbr.rel (%p220) target = $region44
        $region43: #{tpu_custom_call.1} parent=35 // pred_region
          %223 = dma.done %s216, 16384
        $region44: #{tpu_custom_call.1} parent=35 // pred_fallthru
          _
        %p224 = pneg %p38
        %p225 = pneg %p35
        %s226 = sand.u32 %s51, 1
        %s227 = scalar_lea.sflag [#allocation6], %s226
        %s228 = sand.u32 %s51, 1
        %s229 = smul.addr %s228, 1024
        %s230 = scalar_lea.vmem [#allocation5], %s229
        %p231 = pneg %p64
        %p232 = pneg %p61
        %p233 = scmp.lt.s32.totalorder %s22, 1
        %s234 = scalar_select %p233, %s22, 1
        %s235 = scalar_lea.vmem %s2, %s234
        %p236 = pneg %p90
        %p237 = pneg %p87
        %p238 = scmp.lt.s32.totalorder %s22, 1
        %s239 = scalar_select %p238, %s22, 1
        %s240 = scalar_lea.vmem %s3, %s239
        %p241 = pneg %p116
        %p242 = pneg %p113
        %p243 = pneg %p142
        %p244 = pneg %p139
        %s245 = sand.u32 %s129, 1
        %s246 = scalar_lea.sflag [#allocation4], %s245
        %s247 = sand.u32 %s129, 1
        %s248 = smul.addr %s247, 8
        %s249 = scalar_lea.vmem [#allocation7], %s248
        %p250 = scmp.lt.s32.totalorder %s22, 1
        %s251 = scalar_select %p250, %s22, 1
        %s252 = scalar_lea.vmem %s2, %s251
        %p253 = scmp.lt.s32.totalorder %s22, 1
        %s254 = scalar_select %p253, %s22, 1
        %s255 = scalar_lea.vmem %s3, %s254
        %v257 = vld [vmem:[#allocation2] sm:$0xff]
        %v258 = vld [vmem:[#allocation2 + $0x8] sm:$0xff]
        %v259 = vld [vmem:[#allocation2 + $0x10] sm:$0xff]
        %v260 = vld [vmem:[#allocation2 + $0x18] sm:$0xff]
        %v261 = vld [vmem:[#allocation2 + $0x20] sm:$0xff]
        %v262 = vld [vmem:[#allocation2 + $0x28] sm:$0xff]
        %v263 = vld [vmem:[#allocation2 + $0x30] sm:$0xff]
        %v264 = vld [vmem:[#allocation2 + $0x38] sm:$0xff]
        %v265 = vld [vmem:[%s219] sm:$0xf]
        %v266 = vld [vmem:[%s219 + $0x4] sm:$0xf]
        %v267 = vld [vmem:[%s219 + $0x8] sm:$0xf]
        %v268 = vld [vmem:[%s219 + $0xc] sm:$0xf]
        %v269 = vld [vmem:[%s219 + $0x10] sm:$0xf]
        %v270 = vld [vmem:[%s219 + $0x14] sm:$0xf]
        %v271 = vld [vmem:[%s219 + $0x18] sm:$0xf]
        %v272 = vld [vmem:[%s219 + $0x1c] sm:$0xf]
        %v273 = vld [vmem:[%s219 + $0x20] sm:$0xf]
        %v274 = vld [vmem:[%s219 + $0x24] sm:$0xf]
        %v275 = vld [vmem:[%s219 + $0x28] sm:$0xf]
        %v276 = vld [vmem:[%s219 + $0x2c] sm:$0xf]
        %v277 = vld [vmem:[%s219 + $0x30] sm:$0xf]
        %v278 = vld [vmem:[%s219 + $0x34] sm:$0xf]
        %v279 = vld [vmem:[%s219 + $0x38] sm:$0xf]
        %v280 = vld [vmem:[%s219 + $0x3c] sm:$0xf]
        %v281 = vld [vmem:[%s219 + $0x40] sm:$0xf]
        %v282 = vld [vmem:[%s219 + $0x44] sm:$0xf]
        %v283 = vld [vmem:[%s219 + $0x48] sm:$0xf]
        %v284 = vld [vmem:[%s219 + $0x4c] sm:$0xf]
        %v285 = vld [vmem:[%s219 + $0x50] sm:$0xf]
        %v286 = vld [vmem:[%s219 + $0x54] sm:$0xf]
        %v287 = vld [vmem:[%s219 + $0x58] sm:$0xf]
        %v288 = vld [vmem:[%s219 + $0x5c] sm:$0xf]
        %v289 = vld [vmem:[%s219 + $0x60] sm:$0xf]
        %v290 = vld [vmem:[%s219 + $0x64] sm:$0xf]
        %v291 = vld [vmem:[%s219 + $0x68] sm:$0xf]
        %v292 = vld [vmem:[%s219 + $0x6c] sm:$0xf]
        %v293 = vld [vmem:[%s219 + $0x70] sm:$0xf]
        %v294 = vld [vmem:[%s219 + $0x74] sm:$0xf]
        %v295 = vld [vmem:[%s219 + $0x78] sm:$0xf]
        %v296 = vld [vmem:[%s219 + $0x7c] sm:$0xf]
        %v297 = vld [vmem:[%s219 + $0x80] sm:$0xf]
        %v298 = vld [vmem:[%s219 + $0x84] sm:$0xf]
        %v299 = vld [vmem:[%s219 + $0x88] sm:$0xf]
        %v300 = vld [vmem:[%s219 + $0x8c] sm:$0xf]
        %v301 = vld [vmem:[%s219 + $0x90] sm:$0xf]
        %v302 = vld [vmem:[%s219 + $0x94] sm:$0xf]
        %v303 = vld [vmem:[%s219 + $0x98] sm:$0xf]
        %v304 = vld [vmem:[%s219 + $0x9c] sm:$0xf]
        %v305 = vld [vmem:[%s219 + $0xa0] sm:$0xf]
        %v306 = vld [vmem:[%s219 + $0xa4] sm:$0xf]
        %v307 = vld [vmem:[%s219 + $0xa8] sm:$0xf]
        %v308 = vld [vmem:[%s219 + $0xac] sm:$0xf]
        %v309 = vld [vmem:[%s219 + $0xb0] sm:$0xf]
        %v310 = vld [vmem:[%s219 + $0xb4] sm:$0xf]
        %v311 = vld [vmem:[%s219 + $0xb8] sm:$0xf]
        %v312 = vld [vmem:[%s219 + $0xbc] sm:$0xf]
        %v313 = vld [vmem:[%s219 + $0xc0] sm:$0xf]
        %v314 = vld [vmem:[%s219 + $0xc4] sm:$0xf]
        %v315 = vld [vmem:[%s219 + $0xc8] sm:$0xf]
        %v316 = vld [vmem:[%s219 + $0xcc] sm:$0xf]
        %v317 = vld [vmem:[%s219 + $0xd0] sm:$0xf]
        %v318 = vld [vmem:[%s219 + $0xd4] sm:$0xf]
        %v319 = vld [vmem:[%s219 + $0xd8] sm:$0xf]
        %v320 = vld [vmem:[%s219 + $0xdc] sm:$0xf]
        %v321 = vld [vmem:[%s219 + $0xe0] sm:$0xf]
        %v322 = vld [vmem:[%s219 + $0xe4] sm:$0xf]
        %v323 = vld [vmem:[%s219 + $0xe8] sm:$0xf]
        %v324 = vld [vmem:[%s219 + $0xec] sm:$0xf]
        %v325 = vld [vmem:[%s219 + $0xf0] sm:$0xf]
        %v326 = vld [vmem:[%s219 + $0xf4] sm:$0xf]
        %v327 = vld [vmem:[%s219 + $0xf8] sm:$0xf]
        %v328 = vld [vmem:[%s219 + $0xfc] sm:$0xf]
        %v329 = vld [vmem:[%s219 + $0x100] sm:$0xf]
        %v330 = vld [vmem:[%s219 + $0x104] sm:$0xf]
        %v331 = vld [vmem:[%s219 + $0x108] sm:$0xf]
        %v332 = vld [vmem:[%s219 + $0x10c] sm:$0xf]
        %v333 = vld [vmem:[%s219 + $0x110] sm:$0xf]
        %v334 = vld [vmem:[%s219 + $0x114] sm:$0xf]
        %v335 = vld [vmem:[%s219 + $0x118] sm:$0xf]
        %v336 = vld [vmem:[%s219 + $0x11c] sm:$0xf]
        %v337 = vld [vmem:[%s219 + $0x120] sm:$0xf]
        %v338 = vld [vmem:[%s219 + $0x124] sm:$0xf]
        %v339 = vld [vmem:[%s219 + $0x128] sm:$0xf]
        %v340 = vld [vmem:[%s219 + $0x12c] sm:$0xf]
        %v341 = vld [vmem:[%s219 + $0x130] sm:$0xf]
        %v342 = vld [vmem:[%s219 + $0x134] sm:$0xf]
        %v343 = vld [vmem:[%s219 + $0x138] sm:$0xf]
        %v344 = vld [vmem:[%s219 + $0x13c] sm:$0xf]
        %v345 = vld [vmem:[%s219 + $0x140] sm:$0xf]
        %v346 = vld [vmem:[%s219 + $0x144] sm:$0xf]
        %v347 = vld [vmem:[%s219 + $0x148] sm:$0xf]
        %v348 = vld [vmem:[%s219 + $0x14c] sm:$0xf]
        %v349 = vld [vmem:[%s219 + $0x150] sm:$0xf]
        %v350 = vld [vmem:[%s219 + $0x154] sm:$0xf]
        %v351 = vld [vmem:[%s219 + $0x158] sm:$0xf]
        %v352 = vld [vmem:[%s219 + $0x15c] sm:$0xf]
        %v353 = vld [vmem:[%s219 + $0x160] sm:$0xf]
        %v354 = vld [vmem:[%s219 + $0x164] sm:$0xf]
        %v355 = vld [vmem:[%s219 + $0x168] sm:$0xf]
        %v356 = vld [vmem:[%s219 + $0x16c] sm:$0xf]
        %v357 = vld [vmem:[%s219 + $0x170] sm:$0xf]
        %v358 = vld [vmem:[%s219 + $0x174] sm:$0xf]
        %v359 = vld [vmem:[%s219 + $0x178] sm:$0xf]
        %v360 = vld [vmem:[%s219 + $0x17c] sm:$0xf]
        %v361 = vld [vmem:[%s219 + $0x180] sm:$0xf]
        %v362 = vld [vmem:[%s219 + $0x184] sm:$0xf]
        %v363 = vld [vmem:[%s219 + $0x188] sm:$0xf]
        %v364 = vld [vmem:[%s219 + $0x18c] sm:$0xf]
        %v365 = vld [vmem:[%s219 + $0x190] sm:$0xf]
        %v366 = vld [vmem:[%s219 + $0x194] sm:$0xf]
        %v367 = vld [vmem:[%s219 + $0x198] sm:$0xf]
        %v368 = vld [vmem:[%s219 + $0x19c] sm:$0xf]
        %v369 = vld [vmem:[%s219 + $0x1a0] sm:$0xf]
        %v370 = vld [vmem:[%s219 + $0x1a4] sm:$0xf]
        %v371 = vld [vmem:[%s219 + $0x1a8] sm:$0xf]
        %v372 = vld [vmem:[%s219 + $0x1ac] sm:$0xf]
        %v373 = vld [vmem:[%s219 + $0x1b0] sm:$0xf]
        %v374 = vld [vmem:[%s219 + $0x1b4] sm:$0xf]
        %v375 = vld [vmem:[%s219 + $0x1b8] sm:$0xf]
        %v376 = vld [vmem:[%s219 + $0x1bc] sm:$0xf]
        %v377 = vld [vmem:[%s219 + $0x1c0] sm:$0xf]
        %v378 = vld [vmem:[%s219 + $0x1c4] sm:$0xf]
        %v379 = vld [vmem:[%s219 + $0x1c8] sm:$0xf]
        %v380 = vld [vmem:[%s219 + $0x1cc] sm:$0xf]
        %v381 = vld [vmem:[%s219 + $0x1d0] sm:$0xf]
        %v382 = vld [vmem:[%s219 + $0x1d4] sm:$0xf]
        %v383 = vld [vmem:[%s219 + $0x1d8] sm:$0xf]
        %v384 = vld [vmem:[%s219 + $0x1dc] sm:$0xf]
        %v385 = vld [vmem:[%s219 + $0x1e0] sm:$0xf]
        %v386 = vld [vmem:[%s219 + $0x1e4] sm:$0xf]
        %v387 = vld [vmem:[%s219 + $0x1e8] sm:$0xf]
        %v388 = vld [vmem:[%s219 + $0x1ec] sm:$0xf]
        %v389 = vld [vmem:[%s219 + $0x1f0] sm:$0xf]
        %v390 = vld [vmem:[%s219 + $0x1f4] sm:$0xf]
        %v391 = vld [vmem:[%s219 + $0x1f8] sm:$0xf]
        %v392 = vld [vmem:[%s219 + $0x1fc] sm:$0xf]
        %v393 = vld [vmem:[%s219 + $0x200] sm:$0xf]
        %v394 = vld [vmem:[%s219 + $0x204] sm:$0xf]
        %v395 = vld [vmem:[%s219 + $0x208] sm:$0xf]
        %v396 = vld [vmem:[%s219 + $0x20c] sm:$0xf]
        %v397 = vld [vmem:[%s219 + $0x210] sm:$0xf]
        %v398 = vld [vmem:[%s219 + $0x214] sm:$0xf]
        %v399 = vld [vmem:[%s219 + $0x218] sm:$0xf]
        %v400 = vld [vmem:[%s219 + $0x21c] sm:$0xf]
        %v401 = vld [vmem:[%s219 + $0x220] sm:$0xf]
        %v402 = vld [vmem:[%s219 + $0x224] sm:$0xf]
        %v403 = vld [vmem:[%s219 + $0x228] sm:$0xf]
        %v404 = vld [vmem:[%s219 + $0x22c] sm:$0xf]
        %v405 = vld [vmem:[%s219 + $0x230] sm:$0xf]
        %v406 = vld [vmem:[%s219 + $0x234] sm:$0xf]
        %v407 = vld [vmem:[%s219 + $0x238] sm:$0xf]
        %v408 = vld [vmem:[%s219 + $0x23c] sm:$0xf]
        %v409 = vld [vmem:[%s219 + $0x240] sm:$0xf]
        %v410 = vld [vmem:[%s219 + $0x244] sm:$0xf]
        %v411 = vld [vmem:[%s219 + $0x248] sm:$0xf]
        %v412 = vld [vmem:[%s219 + $0x24c] sm:$0xf]
        %v413 = vld [vmem:[%s219 + $0x250] sm:$0xf]
        %v414 = vld [vmem:[%s219 + $0x254] sm:$0xf]
        %v415 = vld [vmem:[%s219 + $0x258] sm:$0xf]
        %v416 = vld [vmem:[%s219 + $0x25c] sm:$0xf]
        %v417 = vld [vmem:[%s219 + $0x260] sm:$0xf]
        %v418 = vld [vmem:[%s219 + $0x264] sm:$0xf]
        %v419 = vld [vmem:[%s219 + $0x268] sm:$0xf]
        %v420 = vld [vmem:[%s219 + $0x26c] sm:$0xf]
        %v421 = vld [vmem:[%s219 + $0x270] sm:$0xf]
        %v422 = vld [vmem:[%s219 + $0x274] sm:$0xf]
        %v423 = vld [vmem:[%s219 + $0x278] sm:$0xf]
        %v424 = vld [vmem:[%s219 + $0x27c] sm:$0xf]
        %v425 = vld [vmem:[%s219 + $0x280] sm:$0xf]
        %v426 = vld [vmem:[%s219 + $0x284] sm:$0xf]
        %v427 = vld [vmem:[%s219 + $0x288] sm:$0xf]
        %v428 = vld [vmem:[%s219 + $0x28c] sm:$0xf]
        %v429 = vld [vmem:[%s219 + $0x290] sm:$0xf]
        %v430 = vld [vmem:[%s219 + $0x294] sm:$0xf]
        %v431 = vld [vmem:[%s219 + $0x298] sm:$0xf]
        %v432 = vld [vmem:[%s219 + $0x29c] sm:$0xf]
        %v433 = vld [vmem:[%s219 + $0x2a0] sm:$0xf]
        %v434 = vld [vmem:[%s219 + $0x2a4] sm:$0xf]
        %v435 = vld [vmem:[%s219 + $0x2a8] sm:$0xf]
        %v436 = vld [vmem:[%s219 + $0x2ac] sm:$0xf]
        %v437 = vld [vmem:[%s219 + $0x2b0] sm:$0xf]
        %v438 = vld [vmem:[%s219 + $0x2b4] sm:$0xf]
        %v439 = vld [vmem:[%s219 + $0x2b8] sm:$0xf]
        %v440 = vld [vmem:[%s219 + $0x2bc] sm:$0xf]
        %v441 = vld [vmem:[%s219 + $0x2c0] sm:$0xf]
        %v442 = vld [vmem:[%s219 + $0x2c4] sm:$0xf]
        %v443 = vld [vmem:[%s219 + $0x2c8] sm:$0xf]
        %v444 = vld [vmem:[%s219 + $0x2cc] sm:$0xf]
        %v445 = vld [vmem:[%s219 + $0x2d0] sm:$0xf]
        %v446 = vld [vmem:[%s219 + $0x2d4] sm:$0xf]
        %v447 = vld [vmem:[%s219 + $0x2d8] sm:$0xf]
        %v448 = vld [vmem:[%s219 + $0x2dc] sm:$0xf]
        %v449 = vld [vmem:[%s219 + $0x2e0] sm:$0xf]
        %v450 = vld [vmem:[%s219 + $0x2e4] sm:$0xf]
        %v451 = vld [vmem:[%s219 + $0x2e8] sm:$0xf]
        %v452 = vld [vmem:[%s219 + $0x2ec] sm:$0xf]
        %v453 = vld [vmem:[%s219 + $0x2f0] sm:$0xf]
        %v454 = vld [vmem:[%s219 + $0x2f4] sm:$0xf]
        %v455 = vld [vmem:[%s219 + $0x2f8] sm:$0xf]
        %v456 = vld [vmem:[%s219 + $0x2fc] sm:$0xf]
        %v457 = vld [vmem:[%s219 + $0x300] sm:$0xf]
        %v458 = vld [vmem:[%s219 + $0x304] sm:$0xf]
        %v459 = vld [vmem:[%s219 + $0x308] sm:$0xf]
        %v460 = vld [vmem:[%s219 + $0x30c] sm:$0xf]
        %v461 = vld [vmem:[%s219 + $0x310] sm:$0xf]
        %v462 = vld [vmem:[%s219 + $0x314] sm:$0xf]
        %v463 = vld [vmem:[%s219 + $0x318] sm:$0xf]
        %v464 = vld [vmem:[%s219 + $0x31c] sm:$0xf]
        %v465 = vld [vmem:[%s219 + $0x320] sm:$0xf]
        %v466 = vld [vmem:[%s219 + $0x324] sm:$0xf]
        %v467 = vld [vmem:[%s219 + $0x328] sm:$0xf]
        %v468 = vld [vmem:[%s219 + $0x32c] sm:$0xf]
        %v469 = vld [vmem:[%s219 + $0x330] sm:$0xf]
        %v470 = vld [vmem:[%s219 + $0x334] sm:$0xf]
        %v471 = vld [vmem:[%s219 + $0x338] sm:$0xf]
        %v472 = vld [vmem:[%s219 + $0x33c] sm:$0xf]
        %v473 = vld [vmem:[%s219 + $0x340] sm:$0xf]
        %v474 = vld [vmem:[%s219 + $0x344] sm:$0xf]
        %v475 = vld [vmem:[%s219 + $0x348] sm:$0xf]
        %v476 = vld [vmem:[%s219 + $0x34c] sm:$0xf]
        %v477 = vld [vmem:[%s219 + $0x350] sm:$0xf]
        %v478 = vld [vmem:[%s219 + $0x354] sm:$0xf]
        %v479 = vld [vmem:[%s219 + $0x358] sm:$0xf]
        %v480 = vld [vmem:[%s219 + $0x35c] sm:$0xf]
        %v481 = vld [vmem:[%s219 + $0x360] sm:$0xf]
        %v482 = vld [vmem:[%s219 + $0x364] sm:$0xf]
        %v483 = vld [vmem:[%s219 + $0x368] sm:$0xf]
        %v484 = vld [vmem:[%s219 + $0x36c] sm:$0xf]
        %v485 = vld [vmem:[%s219 + $0x370] sm:$0xf]
        %v486 = vld [vmem:[%s219 + $0x374] sm:$0xf]
        %v487 = vld [vmem:[%s219 + $0x378] sm:$0xf]
        %v488 = vld [vmem:[%s219 + $0x37c] sm:$0xf]
        %v489 = vld [vmem:[%s219 + $0x380] sm:$0xf]
        %v490 = vld [vmem:[%s219 + $0x384] sm:$0xf]
        %v491 = vld [vmem:[%s219 + $0x388] sm:$0xf]
        %v492 = vld [vmem:[%s219 + $0x38c] sm:$0xf]
        %v493 = vld [vmem:[%s219 + $0x390] sm:$0xf]
        %v494 = vld [vmem:[%s219 + $0x394] sm:$0xf]
        %v495 = vld [vmem:[%s219 + $0x398] sm:$0xf]
        %v496 = vld [vmem:[%s219 + $0x39c] sm:$0xf]
        %v497 = vld [vmem:[%s219 + $0x3a0] sm:$0xf]
        %v498 = vld [vmem:[%s219 + $0x3a4] sm:$0xf]
        %v499 = vld [vmem:[%s219 + $0x3a8] sm:$0xf]
        %v500 = vld [vmem:[%s219 + $0x3ac] sm:$0xf]
        %v501 = vld [vmem:[%s219 + $0x3b0] sm:$0xf]
        %v502 = vld [vmem:[%s219 + $0x3b4] sm:$0xf]
        %v503 = vld [vmem:[%s219 + $0x3b8] sm:$0xf]
        %v504 = vld [vmem:[%s219 + $0x3bc] sm:$0xf]
        %v505 = vld [vmem:[%s219 + $0x3c0] sm:$0xf]
        %v506 = vld [vmem:[%s219 + $0x3c4] sm:$0xf]
        %v507 = vld [vmem:[%s219 + $0x3c8] sm:$0xf]
        %v508 = vld [vmem:[%s219 + $0x3cc] sm:$0xf]
        %v509 = vld [vmem:[%s219 + $0x3d0] sm:$0xf]
        %v510 = vld [vmem:[%s219 + $0x3d4] sm:$0xf]
        %v511 = vld [vmem:[%s219 + $0x3d8] sm:$0xf]
        %v512 = vld [vmem:[%s219 + $0x3dc] sm:$0xf]
        %v513 = vld [vmem:[%s219 + $0x3e0] sm:$0xf]
        %v514 = vld [vmem:[%s219 + $0x3e4] sm:$0xf]
        %v515 = vld [vmem:[%s219 + $0x3e8] sm:$0xf]
        %v516 = vld [vmem:[%s219 + $0x3ec] sm:$0xf]
        %v517 = vld [vmem:[%s219 + $0x3f0] sm:$0xf]
        %v518 = vld [vmem:[%s219 + $0x3f4] sm:$0xf]
        %v519 = vld [vmem:[%s219 + $0x3f8] sm:$0xf]
        %v520 = vld [vmem:[%s219 + $0x3fc] sm:$0xf]
        %v529 = vunpack.c.l.b16 %v257
        %v530 = vunpack.c.h.b16 %v257
        %v531 = vunpack.c.l.b16 %v258
        %v532 = vunpack.c.h.b16 %v258
        %v533 = vunpack.c.l.b16 %v259
        %v534 = vunpack.c.h.b16 %v259
        %v535 = vunpack.c.l.b16 %v260
        %v536 = vunpack.c.h.b16 %v260
        %v537 = vunpack.c.l.b16 %v261
        %v538 = vunpack.c.h.b16 %v261
        %v539 = vunpack.c.l.b16 %v262
        %v540 = vunpack.c.h.b16 %v262
        %v541 = vunpack.c.l.b16 %v263
        %v542 = vunpack.c.h.b16 %v263
        %v543 = vunpack.c.l.b16 %v264
        %v544 = vunpack.c.h.b16 %v264
        %v545 = vpack.c.b16 %v529, %v529
        %v546 = vpack.c.b16 %v530, %v530
        %v547 = vpack.c.b16 %v531, %v531
        %v548 = vpack.c.b16 %v532, %v532
        %v549 = vpack.c.b16 %v533, %v533
        %v550 = vpack.c.b16 %v534, %v534
        %v551 = vpack.c.b16 %v535, %v535
        %v552 = vpack.c.b16 %v536, %v536
        %v553 = vpack.c.b16 %v537, %v537
        %v554 = vpack.c.b16 %v538, %v538
        %v555 = vpack.c.b16 %v539, %v539
        %v556 = vpack.c.b16 %v540, %v540
        %v557 = vpack.c.b16 %v541, %v541
        %v558 = vpack.c.b16 %v542, %v542
        %v559 = vpack.c.b16 %v543, %v543
        %v560 = vpack.c.b16 %v544, %v544
        %v833 = vunpack.c.l.b16 %v265
        %v834 = vunpack.c.l.b16 %v266
        %v835 = vunpack.c.l.b16 %v267
        %v836 = vunpack.c.l.b16 %v268
        %v837 = vunpack.c.l.b16 %v269
        %v838 = vunpack.c.l.b16 %v270
        %v839 = vunpack.c.l.b16 %v271
        %v840 = vunpack.c.l.b16 %v272
        %v841 = vunpack.c.l.b16 %v273
        %v842 = vunpack.c.l.b16 %v274
        %v843 = vunpack.c.l.b16 %v275
        %v844 = vunpack.c.l.b16 %v276
        %v845 = vunpack.c.l.b16 %v277
        %v846 = vunpack.c.l.b16 %v278
        %v847 = vunpack.c.l.b16 %v279
        %v848 = vunpack.c.l.b16 %v280
        %v849 = vunpack.c.l.b16 %v281
        %v850 = vunpack.c.l.b16 %v282
        %v851 = vunpack.c.l.b16 %v283
        %v852 = vunpack.c.l.b16 %v284
        %v853 = vunpack.c.l.b16 %v285
        %v854 = vunpack.c.l.b16 %v286
        %v855 = vunpack.c.l.b16 %v287
        %v856 = vunpack.c.l.b16 %v288
        %v857 = vunpack.c.l.b16 %v289
        %v858 = vunpack.c.l.b16 %v290
        %v859 = vunpack.c.l.b16 %v291
        %v860 = vunpack.c.l.b16 %v292
        %v861 = vunpack.c.l.b16 %v293
        %v862 = vunpack.c.l.b16 %v294
        %v863 = vunpack.c.l.b16 %v295
        %v864 = vunpack.c.l.b16 %v296
        %v865 = vunpack.c.l.b16 %v297
        %v866 = vunpack.c.l.b16 %v298
        %v867 = vunpack.c.l.b16 %v299
        %v868 = vunpack.c.l.b16 %v300
        %v869 = vunpack.c.l.b16 %v301
        %v870 = vunpack.c.l.b16 %v302
        %v871 = vunpack.c.l.b16 %v303
        %v872 = vunpack.c.l.b16 %v304
        %v873 = vunpack.c.l.b16 %v305
        %v874 = vunpack.c.l.b16 %v306
        %v875 = vunpack.c.l.b16 %v307
        %v876 = vunpack.c.l.b16 %v308
        %v877 = vunpack.c.l.b16 %v309
        %v878 = vunpack.c.l.b16 %v310
        %v879 = vunpack.c.l.b16 %v311
        %v880 = vunpack.c.l.b16 %v312
        %v881 = vunpack.c.l.b16 %v313
        %v882 = vunpack.c.l.b16 %v314
        %v883 = vunpack.c.l.b16 %v315
        %v884 = vunpack.c.l.b16 %v316
        %v885 = vunpack.c.l.b16 %v317
        %v886 = vunpack.c.l.b16 %v318
        %v887 = vunpack.c.l.b16 %v319
        %v888 = vunpack.c.l.b16 %v320
        %v889 = vunpack.c.l.b16 %v321
        %v890 = vunpack.c.l.b16 %v322
        %v891 = vunpack.c.l.b16 %v323
        %v892 = vunpack.c.l.b16 %v324
        %v893 = vunpack.c.l.b16 %v325
        %v894 = vunpack.c.l.b16 %v326
        %v895 = vunpack.c.l.b16 %v327
        %v896 = vunpack.c.l.b16 %v328
        %v897 = vunpack.c.l.b16 %v329
        %v898 = vunpack.c.l.b16 %v330
        %v899 = vunpack.c.l.b16 %v331
        %v900 = vunpack.c.l.b16 %v332
        %v901 = vunpack.c.l.b16 %v333
        %v902 = vunpack.c.l.b16 %v334
        %v903 = vunpack.c.l.b16 %v335
        %v904 = vunpack.c.l.b16 %v336
        %v905 = vunpack.c.l.b16 %v337
        %v906 = vunpack.c.l.b16 %v338
        %v907 = vunpack.c.l.b16 %v339
        %v908 = vunpack.c.l.b16 %v340
        %v909 = vunpack.c.l.b16 %v341
        %v910 = vunpack.c.l.b16 %v342
        %v911 = vunpack.c.l.b16 %v343
        %v912 = vunpack.c.l.b16 %v344
        %v913 = vunpack.c.l.b16 %v345
        %v914 = vunpack.c.l.b16 %v346
        %v915 = vunpack.c.l.b16 %v347
        %v916 = vunpack.c.l.b16 %v348
        %v917 = vunpack.c.l.b16 %v349
        %v918 = vunpack.c.l.b16 %v350
        %v919 = vunpack.c.l.b16 %v351
        %v920 = vunpack.c.l.b16 %v352
        %v921 = vunpack.c.l.b16 %v353
        %v922 = vunpack.c.l.b16 %v354
        %v923 = vunpack.c.l.b16 %v355
        %v924 = vunpack.c.l.b16 %v356
        %v925 = vunpack.c.l.b16 %v357
        %v926 = vunpack.c.l.b16 %v358
        %v927 = vunpack.c.l.b16 %v359
        %v928 = vunpack.c.l.b16 %v360
        %v929 = vunpack.c.l.b16 %v361
        %v930 = vunpack.c.l.b16 %v362
        %v931 = vunpack.c.l.b16 %v363
        %v932 = vunpack.c.l.b16 %v364
        %v933 = vunpack.c.l.b16 %v365
        %v934 = vunpack.c.l.b16 %v366
        %v935 = vunpack.c.l.b16 %v367
        %v936 = vunpack.c.l.b16 %v368
        %v937 = vunpack.c.l.b16 %v369
        %v938 = vunpack.c.l.b16 %v370
        %v939 = vunpack.c.l.b16 %v371
        %v940 = vunpack.c.l.b16 %v372
        %v941 = vunpack.c.l.b16 %v373
        %v942 = vunpack.c.l.b16 %v374
        %v943 = vunpack.c.l.b16 %v375
        %v944 = vunpack.c.l.b16 %v376
        %v945 = vunpack.c.l.b16 %v377
        %v946 = vunpack.c.l.b16 %v378
        %v947 = vunpack.c.l.b16 %v379
        %v948 = vunpack.c.l.b16 %v380
        %v949 = vunpack.c.l.b16 %v381
        %v950 = vunpack.c.l.b16 %v382
        %v951 = vunpack.c.l.b16 %v383
        %v952 = vunpack.c.l.b16 %v384
        %v953 = vunpack.c.l.b16 %v385
        %v954 = vunpack.c.l.b16 %v386
        %v955 = vunpack.c.l.b16 %v387
        %v956 = vunpack.c.l.b16 %v388
        %v957 = vunpack.c.l.b16 %v389
        %v958 = vunpack.c.l.b16 %v390
        %v959 = vunpack.c.l.b16 %v391
        %v960 = vunpack.c.l.b16 %v392
        %v961 = vunpack.c.l.b16 %v393
        %v962 = vunpack.c.l.b16 %v394
        %v963 = vunpack.c.l.b16 %v395
        %v964 = vunpack.c.l.b16 %v396
        %v965 = vunpack.c.l.b16 %v397
        %v966 = vunpack.c.l.b16 %v398
        %v967 = vunpack.c.l.b16 %v399
        %v968 = vunpack.c.l.b16 %v400
        %v969 = vunpack.c.l.b16 %v401
        %v970 = vunpack.c.l.b16 %v402
        %v971 = vunpack.c.l.b16 %v403
        %v972 = vunpack.c.l.b16 %v404
        %v973 = vunpack.c.l.b16 %v405
        %v974 = vunpack.c.l.b16 %v406
        %v975 = vunpack.c.l.b16 %v407
        %v976 = vunpack.c.l.b16 %v408
        %v977 = vunpack.c.l.b16 %v409
        %v978 = vunpack.c.l.b16 %v410
        %v979 = vunpack.c.l.b16 %v411
        %v980 = vunpack.c.l.b16 %v412
        %v981 = vunpack.c.l.b16 %v413
        %v982 = vunpack.c.l.b16 %v414
        %v983 = vunpack.c.l.b16 %v415
        %v984 = vunpack.c.l.b16 %v416
        %v985 = vunpack.c.l.b16 %v417
        %v986 = vunpack.c.l.b16 %v418
        %v987 = vunpack.c.l.b16 %v419
        %v988 = vunpack.c.l.b16 %v420
        %v989 = vunpack.c.l.b16 %v421
        %v990 = vunpack.c.l.b16 %v422
        %v991 = vunpack.c.l.b16 %v423
        %v992 = vunpack.c.l.b16 %v424
        %v993 = vunpack.c.l.b16 %v425
        %v994 = vunpack.c.l.b16 %v426
        %v995 = vunpack.c.l.b16 %v427
        %v996 = vunpack.c.l.b16 %v428
        %v997 = vunpack.c.l.b16 %v429
        %v998 = vunpack.c.l.b16 %v430
        %v999 = vunpack.c.l.b16 %v431
        %v1000 = vunpack.c.l.b16 %v432
        %v1001 = vunpack.c.l.b16 %v433
        %v1002 = vunpack.c.l.b16 %v434
        %v1003 = vunpack.c.l.b16 %v435
        %v1004 = vunpack.c.l.b16 %v436
        %v1005 = vunpack.c.l.b16 %v437
        %v1006 = vunpack.c.l.b16 %v438
        %v1007 = vunpack.c.l.b16 %v439
        %v1008 = vunpack.c.l.b16 %v440
        %v1009 = vunpack.c.l.b16 %v441
        %v1010 = vunpack.c.l.b16 %v442
        %v1011 = vunpack.c.l.b16 %v443
        %v1012 = vunpack.c.l.b16 %v444
        %v1013 = vunpack.c.l.b16 %v445
        %v1014 = vunpack.c.l.b16 %v446
        %v1015 = vunpack.c.l.b16 %v447
        %v1016 = vunpack.c.l.b16 %v448
        %v1017 = vunpack.c.l.b16 %v449
        %v1018 = vunpack.c.l.b16 %v450
        %v1019 = vunpack.c.l.b16 %v451
        %v1020 = vunpack.c.l.b16 %v452
        %v1021 = vunpack.c.l.b16 %v453
        %v1022 = vunpack.c.l.b16 %v454
        %v1023 = vunpack.c.l.b16 %v455
        %v1024 = vunpack.c.l.b16 %v456
        %v1025 = vunpack.c.l.b16 %v457
        %v1026 = vunpack.c.l.b16 %v458
        %v1027 = vunpack.c.l.b16 %v459
        %v1028 = vunpack.c.l.b16 %v460
        %v1029 = vunpack.c.l.b16 %v461
        %v1030 = vunpack.c.l.b16 %v462
        %v1031 = vunpack.c.l.b16 %v463
        %v1032 = vunpack.c.l.b16 %v464
        %v1033 = vunpack.c.l.b16 %v465
        %v1034 = vunpack.c.l.b16 %v466
        %v1035 = vunpack.c.l.b16 %v467
        %v1036 = vunpack.c.l.b16 %v468
        %v1037 = vunpack.c.l.b16 %v469
        %v1038 = vunpack.c.l.b16 %v470
        %v1039 = vunpack.c.l.b16 %v471
        %v1040 = vunpack.c.l.b16 %v472
        %v1041 = vunpack.c.l.b16 %v473
        %v1042 = vunpack.c.l.b16 %v474
        %v1043 = vunpack.c.l.b16 %v475
        %v1044 = vunpack.c.l.b16 %v476
        %v1045 = vunpack.c.l.b16 %v477
        %v1046 = vunpack.c.l.b16 %v478
        %v1047 = vunpack.c.l.b16 %v479
        %v1048 = vunpack.c.l.b16 %v480
        %v1049 = vunpack.c.l.b16 %v481
        %v1050 = vunpack.c.l.b16 %v482
        %v1051 = vunpack.c.l.b16 %v483
        %v1052 = vunpack.c.l.b16 %v484
        %v1053 = vunpack.c.l.b16 %v485
        %v1054 = vunpack.c.l.b16 %v486
        %v1055 = vunpack.c.l.b16 %v487
        %v1056 = vunpack.c.l.b16 %v488
        %v1057 = vunpack.c.l.b16 %v489
        %v1058 = vunpack.c.l.b16 %v490
        %v1059 = vunpack.c.l.b16 %v491
        %v1060 = vunpack.c.l.b16 %v492
        %v1061 = vunpack.c.l.b16 %v493
        %v1062 = vunpack.c.l.b16 %v494
        %v1063 = vunpack.c.l.b16 %v495
        %v1064 = vunpack.c.l.b16 %v496
        %v1065 = vunpack.c.l.b16 %v497
        %v1066 = vunpack.c.l.b16 %v498
        %v1067 = vunpack.c.l.b16 %v499
        %v1068 = vunpack.c.l.b16 %v500
        %v1069 = vunpack.c.l.b16 %v501
        %v1070 = vunpack.c.l.b16 %v502
        %v1071 = vunpack.c.l.b16 %v503
        %v1072 = vunpack.c.l.b16 %v504
        %v1073 = vunpack.c.l.b16 %v505
        %v1074 = vunpack.c.l.b16 %v506
        %v1075 = vunpack.c.l.b16 %v507
        %v1076 = vunpack.c.l.b16 %v508
        %v1077 = vunpack.c.l.b16 %v509
        %v1078 = vunpack.c.l.b16 %v510
        %v1079 = vunpack.c.l.b16 %v511
        %v1080 = vunpack.c.l.b16 %v512
        %v1081 = vunpack.c.l.b16 %v513
        %v1082 = vunpack.c.l.b16 %v514
        %v1083 = vunpack.c.l.b16 %v515
        %v1084 = vunpack.c.l.b16 %v516
        %v1085 = vunpack.c.l.b16 %v517
        %v1086 = vunpack.c.l.b16 %v518
        %v1087 = vunpack.c.l.b16 %v519
        %v1088 = vunpack.c.l.b16 %v520
        %v1089 = vpack.c.b16 %v834, %v833
        %v1090 = vpack.c.b16 %v836, %v835
        %v1091 = vpack.c.b16 %v838, %v837
        %v1092 = vpack.c.b16 %v840, %v839
        %v1093 = vpack.c.b16 %v842, %v841
        %v1094 = vpack.c.b16 %v844, %v843
        %v1095 = vpack.c.b16 %v846, %v845
        %v1096 = vpack.c.b16 %v848, %v847
        %v1097 = vpack.c.b16 %v850, %v849
        %v1098 = vpack.c.b16 %v852, %v851
        %v1099 = vpack.c.b16 %v854, %v853
        %v1100 = vpack.c.b16 %v856, %v855
        %v1101 = vpack.c.b16 %v858, %v857
        %v1102 = vpack.c.b16 %v860, %v859
        %v1103 = vpack.c.b16 %v862, %v861
        %v1104 = vpack.c.b16 %v864, %v863
        %v1105 = vpack.c.b16 %v866, %v865
        %v1106 = vpack.c.b16 %v868, %v867
        %v1107 = vpack.c.b16 %v870, %v869
        %v1108 = vpack.c.b16 %v872, %v871
        %v1109 = vpack.c.b16 %v874, %v873
        %v1110 = vpack.c.b16 %v876, %v875
        %v1111 = vpack.c.b16 %v878, %v877
        %v1112 = vpack.c.b16 %v880, %v879
        %v1113 = vpack.c.b16 %v882, %v881
        %v1114 = vpack.c.b16 %v884, %v883
        %v1115 = vpack.c.b16 %v886, %v885
        %v1116 = vpack.c.b16 %v888, %v887
        %v1117 = vpack.c.b16 %v890, %v889
        %v1118 = vpack.c.b16 %v892, %v891
        %v1119 = vpack.c.b16 %v894, %v893
        %v1120 = vpack.c.b16 %v896, %v895
        %v1121 = vpack.c.b16 %v898, %v897
        %v1122 = vpack.c.b16 %v900, %v899
        %v1123 = vpack.c.b16 %v902, %v901
        %v1124 = vpack.c.b16 %v904, %v903
        %v1125 = vpack.c.b16 %v906, %v905
        %v1126 = vpack.c.b16 %v908, %v907
        %v1127 = vpack.c.b16 %v910, %v909
        %v1128 = vpack.c.b16 %v912, %v911
        %v1129 = vpack.c.b16 %v914, %v913
        %v1130 = vpack.c.b16 %v916, %v915
        %v1131 = vpack.c.b16 %v918, %v917
        %v1132 = vpack.c.b16 %v920, %v919
        %v1133 = vpack.c.b16 %v922, %v921
        %v1134 = vpack.c.b16 %v924, %v923
        %v1135 = vpack.c.b16 %v926, %v925
        %v1136 = vpack.c.b16 %v928, %v927
        %v1137 = vpack.c.b16 %v930, %v929
        %v1138 = vpack.c.b16 %v932, %v931
        %v1139 = vpack.c.b16 %v934, %v933
        %v1140 = vpack.c.b16 %v936, %v935
        %v1141 = vpack.c.b16 %v938, %v937
        %v1142 = vpack.c.b16 %v940, %v939
        %v1143 = vpack.c.b16 %v942, %v941
        %v1144 = vpack.c.b16 %v944, %v943
        %v1145 = vpack.c.b16 %v946, %v945
        %v1146 = vpack.c.b16 %v948, %v947
        %v1147 = vpack.c.b16 %v950, %v949
        %v1148 = vpack.c.b16 %v952, %v951
        %v1149 = vpack.c.b16 %v954, %v953
        %v1150 = vpack.c.b16 %v956, %v955
        %v1151 = vpack.c.b16 %v958, %v957
        %v1152 = vpack.c.b16 %v960, %v959
        %v1153 = vpack.c.b16 %v962, %v961
        %v1154 = vpack.c.b16 %v964, %v963
        %v1155 = vpack.c.b16 %v966, %v965
        %v1156 = vpack.c.b16 %v968, %v967
        %v1157 = vpack.c.b16 %v970, %v969
        %v1158 = vpack.c.b16 %v972, %v971
        %v1159 = vpack.c.b16 %v974, %v973
        %v1160 = vpack.c.b16 %v976, %v975
        %v1161 = vpack.c.b16 %v978, %v977
        %v1162 = vpack.c.b16 %v980, %v979
        %v1163 = vpack.c.b16 %v982, %v981
        %v1164 = vpack.c.b16 %v984, %v983
        %v1165 = vpack.c.b16 %v986, %v985
        %v1166 = vpack.c.b16 %v988, %v987
        %v1167 = vpack.c.b16 %v990, %v989
        %v1168 = vpack.c.b16 %v992, %v991
        %v1169 = vpack.c.b16 %v994, %v993
        %v1170 = vpack.c.b16 %v996, %v995
        %v1171 = vpack.c.b16 %v998, %v997
        %v1172 = vpack.c.b16 %v1000, %v999
        %v1173 = vpack.c.b16 %v1002, %v1001
        %v1174 = vpack.c.b16 %v1004, %v1003
        %v1175 = vpack.c.b16 %v1006, %v1005
        %v1176 = vpack.c.b16 %v1008, %v1007
        %v1177 = vpack.c.b16 %v1010, %v1009
        %v1178 = vpack.c.b16 %v1012, %v1011
        %v1179 = vpack.c.b16 %v1014, %v1013
        %v1180 = vpack.c.b16 %v1016, %v1015
        %v1181 = vpack.c.b16 %v1018, %v1017
        %v1182 = vpack.c.b16 %v1020, %v1019
        %v1183 = vpack.c.b16 %v1022, %v1021
        %v1184 = vpack.c.b16 %v1024, %v1023
        %v1185 = vpack.c.b16 %v1026, %v1025
        %v1186 = vpack.c.b16 %v1028, %v1027
        %v1187 = vpack.c.b16 %v1030, %v1029
        %v1188 = vpack.c.b16 %v1032, %v1031
        %v1189 = vpack.c.b16 %v1034, %v1033
        %v1190 = vpack.c.b16 %v1036, %v1035
        %v1191 = vpack.c.b16 %v1038, %v1037
        %v1192 = vpack.c.b16 %v1040, %v1039
        %v1193 = vpack.c.b16 %v1042, %v1041
        %v1194 = vpack.c.b16 %v1044, %v1043
        %v1195 = vpack.c.b16 %v1046, %v1045
        %v1196 = vpack.c.b16 %v1048, %v1047
        %v1197 = vpack.c.b16 %v1050, %v1049
        %v1198 = vpack.c.b16 %v1052, %v1051
        %v1199 = vpack.c.b16 %v1054, %v1053
        %v1200 = vpack.c.b16 %v1056, %v1055
        %v1201 = vpack.c.b16 %v1058, %v1057
        %v1202 = vpack.c.b16 %v1060, %v1059
        %v1203 = vpack.c.b16 %v1062, %v1061
        %v1204 = vpack.c.b16 %v1064, %v1063
        %v1205 = vpack.c.b16 %v1066, %v1065
        %v1206 = vpack.c.b16 %v1068, %v1067
        %v1207 = vpack.c.b16 %v1070, %v1069
        %v1208 = vpack.c.b16 %v1072, %v1071
        %v1209 = vpack.c.b16 %v1074, %v1073
        %v1210 = vpack.c.b16 %v1076, %v1075
        %v1211 = vpack.c.b16 %v1078, %v1077
        %v1212 = vpack.c.b16 %v1080, %v1079
        %v1213 = vpack.c.b16 %v1082, %v1081
        %v1214 = vpack.c.b16 %v1084, %v1083
        %v1215 = vpack.c.b16 %v1086, %v1085
        %v1216 = vpack.c.b16 %v1088, %v1087
        %1345 = vmatprep.subr.bf16.mxu0 0
        %1346 = vmatpush1.bf16.msra.mxu0 %v1089
        %1347 = vmatprep.subr.bf16.mxu0 0
        %1348 = vmatpush1.bf16.msra.mxu0 %v1090
        %1349 = vmatprep.subr.bf16.mxu0 0
        %1350 = vmatpush1.bf16.msra.mxu0 %v1091
        %1351 = vmatprep.subr.bf16.mxu0 0
        %1352 = vmatpush1.bf16.msra.mxu0 %v1092
        %1353 = vmatprep.subr.bf16.mxu0 0
        %1354 = vmatpush1.bf16.msra.mxu0 %v1093
        %1355 = vmatprep.subr.bf16.mxu0 0
        %1356 = vmatpush1.bf16.msra.mxu0 %v1094
        %1357 = vmatprep.subr.bf16.mxu0 0
        %1358 = vmatpush1.bf16.msra.mxu0 %v1095
        %1359 = vmatprep.subr.bf16.mxu0 0
        %1360 = vmatpush1.bf16.msra.mxu0 %v1096
        %1361 = vmatprep.subr.bf16.mxu0 0
        %1362 = vmatpush1.bf16.msra.mxu0 %v1097
        %1363 = vmatprep.subr.bf16.mxu0 0
        %1364 = vmatpush1.bf16.msra.mxu0 %v1098
        %1365 = vmatprep.subr.bf16.mxu0 0
        %1366 = vmatpush1.bf16.msra.mxu0 %v1099
        %1367 = vmatprep.subr.bf16.mxu0 0
        %1368 = vmatpush1.bf16.msra.mxu0 %v1100
        %1369 = vmatprep.subr.bf16.mxu0 0
        %1370 = vmatpush1.bf16.msra.mxu0 %v1101
        %1371 = vmatprep.subr.bf16.mxu0 0
        %1372 = vmatpush1.bf16.msra.mxu0 %v1102
        %1373 = vmatprep.subr.bf16.mxu0 0
        %1374 = vmatpush1.bf16.msra.mxu0 %v1103
        %1375 = vmatprep.subr.bf16.mxu0 0
        %1376 = vmatpush1.bf16.msra.mxu0 %v1104
        %1377 = vmatprep.mubr.bf16.mxu0 %v546
        %1378 = vmatmul.mubr.bf16.gmra.mrb[0].mxu0 %v545
        %v1379 = vpop.f32.mrb[0].mxu0
        %v1380 = vadd.f32 0.0, %v1379
        %v1381 = vpop.f32.mrb[0].mxu0
        %v1382 = vpop.f32.mrb[0].mxu0
        %v1383 = vpop.f32.mrb[0].mxu0
        %1384 = vdwg.mxu0
        %1385 = vmatprep.subr.bf16.mxu0 0
        %1386 = vmatpush1.bf16.msra.mxu0 %v1105
        %1387 = vmatprep.subr.bf16.mxu0 0
        %1388 = vmatpush1.bf16.msra.mxu0 %v1106
        %1389 = vmatprep.subr.bf16.mxu0 0
        %1390 = vmatpush1.bf16.msra.mxu0 %v1107
        %1391 = vmatprep.subr.bf16.mxu0 0
        %1392 = vmatpush1.bf16.msra.mxu0 %v1108
        %1393 = vmatprep.subr.bf16.mxu0 0
        %1394 = vmatpush1.bf16.msra.mxu0 %v1109
        %1395 = vmatprep.subr.bf16.mxu0 0
        %1396 = vmatpush1.bf16.msra.mxu0 %v1110
        %1397 = vmatprep.subr.bf16.mxu0 0
        %1398 = vmatpush1.bf16.msra.mxu0 %v1111
        %1399 = vmatprep.subr.bf16.mxu0 0
        %1400 = vmatpush1.bf16.msra.mxu0 %v1112
        %1401 = vmatprep.subr.bf16.mxu0 0
        %1402 = vmatpush1.bf16.msra.mxu0 %v1113
        %1403 = vmatprep.subr.bf16.mxu0 0
        %1404 = vmatpush1.bf16.msra.mxu0 %v1114
        %1405 = vmatprep.subr.bf16.mxu0 0
        %1406 = vmatpush1.bf16.msra.mxu0 %v1115
        %1407 = vmatprep.subr.bf16.mxu0 0
        %1408 = vmatpush1.bf16.msra.mxu0 %v1116
        %1409 = vmatprep.subr.bf16.mxu0 0
        %1410 = vmatpush1.bf16.msra.mxu0 %v1117
        %1411 = vmatprep.subr.bf16.mxu0 0
        %1412 = vmatpush1.bf16.msra.mxu0 %v1118
        %1413 = vmatprep.subr.bf16.mxu0 0
        %1414 = vmatpush1.bf16.msra.mxu0 %v1119
        %1415 = vmatprep.subr.bf16.mxu0 0
        %1416 = vmatpush1.bf16.msra.mxu0 %v1120
        %1417 = vmatprep.mubr.bf16.mxu0 %v548
        %1418 = vmatmul.mubr.bf16.gmra.mrb[0].mxu0 %v547
        %v1419 = vpop.f32.mrb[0].mxu0
        %v1420 = vadd.f32 %v1380, %v1419
        %v1421 = vpop.f32.mrb[0].mxu0
        %v1422 = vpop.f32.mrb[0].mxu0
        %v1423 = vpop.f32.mrb[0].mxu0
        %1424 = vdwg.mxu0
        %1425 = vmatprep.subr.bf16.mxu0 0
        %1426 = vmatpush1.bf16.msra.mxu0 %v1121
        %1427 = vmatprep.subr.bf16.mxu0 0
        %1428 = vmatpush1.bf16.msra.mxu0 %v1122
        %1429 = vmatprep.subr.bf16.mxu0 0
        %1430 = vmatpush1.bf16.msra.mxu0 %v1123
        %1431 = vmatprep.subr.bf16.mxu0 0
        %1432 = vmatpush1.bf16.msra.mxu0 %v1124
        %1433 = vmatprep.subr.bf16.mxu0 0
        %1434 = vmatpush1.bf16.msra.mxu0 %v1125
        %1435 = vmatprep.subr.bf16.mxu0 0
        %1436 = vmatpush1.bf16.msra.mxu0 %v1126
        %1437 = vmatprep.subr.bf16.mxu0 0
        %1438 = vmatpush1.bf16.msra.mxu0 %v1127
        %1439 = vmatprep.subr.bf16.mxu0 0
        %1440 = vmatpush1.bf16.msra.mxu0 %v1128
        %1441 = vmatprep.subr.bf16.mxu0 0
        %1442 = vmatpush1.bf16.msra.mxu0 %v1129
        %1443 = vmatprep.subr.bf16.mxu0 0
        %1444 = vmatpush1.bf16.msra.mxu0 %v1130
        %1445 = vmatprep.subr.bf16.mxu0 0
        %1446 = vmatpush1.bf16.msra.mxu0 %v1131
        %1447 = vmatprep.subr.bf16.mxu0 0
        %1448 = vmatpush1.bf16.msra.mxu0 %v1132
        %1449 = vmatprep.subr.bf16.mxu0 0
        %1450 = vmatpush1.bf16.msra.mxu0 %v1133
        %1451 = vmatprep.subr.bf16.mxu0 0
        %1452 = vmatpush1.bf16.msra.mxu0 %v1134
        %1453 = vmatprep.subr.bf16.mxu0 0
        %1454 = vmatpush1.bf16.msra.mxu0 %v1135
        %1455 = vmatprep.subr.bf16.mxu0 0
        %1456 = vmatpush1.bf16.msra.mxu0 %v1136
        %1457 = vmatprep.mubr.bf16.mxu0 %v550
        %1458 = vmatmul.mubr.bf16.gmra.mrb[0].mxu0 %v549
        %v1459 = vpop.f32.mrb[0].mxu0
        %v1460 = vadd.f32 %v1420, %v1459
        %v1461 = vpop.f32.mrb[0].mxu0
        %v1462 = vpop.f32.mrb[0].mxu0
        %v1463 = vpop.f32.mrb[0].mxu0
        %1464 = vdwg.mxu0
        %1465 = vmatprep.subr.bf16.mxu0 0
        %1466 = vmatpush1.bf16.msra.mxu0 %v1137
        %1467 = vmatprep.subr.bf16.mxu0 0
        %1468 = vmatpush1.bf16.msra.mxu0 %v1138
        %1469 = vmatprep.subr.bf16.mxu0 0
        %1470 = vmatpush1.bf16.msra.mxu0 %v1139
        %1471 = vmatprep.subr.bf16.mxu0 0
        %1472 = vmatpush1.bf16.msra.mxu0 %v1140
        %1473 = vmatprep.subr.bf16.mxu0 0
        %1474 = vmatpush1.bf16.msra.mxu0 %v1141
        %1475 = vmatprep.subr.bf16.mxu0 0
        %1476 = vmatpush1.bf16.msra.mxu0 %v1142
        %1477 = vmatprep.subr.bf16.mxu0 0
        %1478 = vmatpush1.bf16.msra.mxu0 %v1143
        %1479 = vmatprep.subr.bf16.mxu0 0
        %1480 = vmatpush1.bf16.msra.mxu0 %v1144
        %1481 = vmatprep.subr.bf16.mxu0 0
        %1482 = vmatpush1.bf16.msra.mxu0 %v1145
        %1483 = vmatprep.subr.bf16.mxu0 0
        %1484 = vmatpush1.bf16.msra.mxu0 %v1146
        %1485 = vmatprep.subr.bf16.mxu0 0
        %1486 = vmatpush1.bf16.msra.mxu0 %v1147
        %1487 = vmatprep.subr.bf16.mxu0 0
        %1488 = vmatpush1.bf16.msra.mxu0 %v1148
        %1489 = vmatprep.subr.bf16.mxu0 0
        %1490 = vmatpush1.bf16.msra.mxu0 %v1149
        %1491 = vmatprep.subr.bf16.mxu0 0
        %1492 = vmatpush1.bf16.msra.mxu0 %v1150
        %1493 = vmatprep.subr.bf16.mxu0 0
        %1494 = vmatpush1.bf16.msra.mxu0 %v1151
        %1495 = vmatprep.subr.bf16.mxu0 0
        %1496 = vmatpush1.bf16.msra.mxu0 %v1152
        %1497 = vmatprep.mubr.bf16.mxu0 %v552
        %1498 = vmatmul.mubr.bf16.gmra.mrb[0].mxu0 %v551
        %v1499 = vpop.f32.mrb[0].mxu0
        %v1500 = vadd.f32 %v1460, %v1499
        %v1501 = vpop.f32.mrb[0].mxu0
        %v1502 = vpop.f32.mrb[0].mxu0
        %v1503 = vpop.f32.mrb[0].mxu0
        %1504 = vdwg.mxu0
        %1505 = vmatprep.subr.bf16.mxu0 0
        %1506 = vmatpush1.bf16.msra.mxu0 %v1153
        %1507 = vmatprep.subr.bf16.mxu0 0
        %1508 = vmatpush1.bf16.msra.mxu0 %v1154
        %1509 = vmatprep.subr.bf16.mxu0 0
        %1510 = vmatpush1.bf16.msra.mxu0 %v1155
        %1511 = vmatprep.subr.bf16.mxu0 0
        %1512 = vmatpush1.bf16.msra.mxu0 %v1156
        %1513 = vmatprep.subr.bf16.mxu0 0
        %1514 = vmatpush1.bf16.msra.mxu0 %v1157
        %1515 = vmatprep.subr.bf16.mxu0 0
        %1516 = vmatpush1.bf16.msra.mxu0 %v1158
        %1517 = vmatprep.subr.bf16.mxu0 0
        %1518 = vmatpush1.bf16.msra.mxu0 %v1159
        %1519 = vmatprep.subr.bf16.mxu0 0
        %1520 = vmatpush1.bf16.msra.mxu0 %v1160
        %1521 = vmatprep.subr.bf16.mxu0 0
        %1522 = vmatpush1.bf16.msra.mxu0 %v1161
        %1523 = vmatprep.subr.bf16.mxu0 0
        %1524 = vmatpush1.bf16.msra.mxu0 %v1162
        %1525 = vmatprep.subr.bf16.mxu0 0
        %1526 = vmatpush1.bf16.msra.mxu0 %v1163
        %1527 = vmatprep.subr.bf16.mxu0 0
        %1528 = vmatpush1.bf16.msra.mxu0 %v1164
        %1529 = vmatprep.subr.bf16.mxu0 0
        %1530 = vmatpush1.bf16.msra.mxu0 %v1165
        %1531 = vmatprep.subr.bf16.mxu0 0
        %1532 = vmatpush1.bf16.msra.mxu0 %v1166
        %1533 = vmatprep.subr.bf16.mxu0 0
        %1534 = vmatpush1.bf16.msra.mxu0 %v1167
        %1535 = vmatprep.subr.bf16.mxu0 0
        %1536 = vmatpush1.bf16.msra.mxu0 %v1168
        %1537 = vmatprep.mubr.bf16.mxu0 %v554
        %1538 = vmatmul.mubr.bf16.gmra.mrb[0].mxu0 %v553
        %v1539 = vpop.f32.mrb[0].mxu0
        %v1540 = vadd.f32 %v1500, %v1539
        %v1541 = vpop.f32.mrb[0].mxu0
        %v1542 = vpop.f32.mrb[0].mxu0
        %v1543 = vpop.f32.mrb[0].mxu0
        %1544 = vdwg.mxu0
        %1545 = vmatprep.subr.bf16.mxu0 0
        %1546 = vmatpush1.bf16.msra.mxu0 %v1169
        %1547 = vmatprep.subr.bf16.mxu0 0
        %1548 = vmatpush1.bf16.msra.mxu0 %v1170
        %1549 = vmatprep.subr.bf16.mxu0 0
        %1550 = vmatpush1.bf16.msra.mxu0 %v1171
        %1551 = vmatprep.subr.bf16.mxu0 0
        %1552 = vmatpush1.bf16.msra.mxu0 %v1172
        %1553 = vmatprep.subr.bf16.mxu0 0
        %1554 = vmatpush1.bf16.msra.mxu0 %v1173
        %1555 = vmatprep.subr.bf16.mxu0 0
        %1556 = vmatpush1.bf16.msra.mxu0 %v1174
        %1557 = vmatprep.subr.bf16.mxu0 0
        %1558 = vmatpush1.bf16.msra.mxu0 %v1175
        %1559 = vmatprep.subr.bf16.mxu0 0
        %1560 = vmatpush1.bf16.msra.mxu0 %v1176
        %1561 = vmatprep.subr.bf16.mxu0 0
        %1562 = vmatpush1.bf16.msra.mxu0 %v1177
        %1563 = vmatprep.subr.bf16.mxu0 0
        %1564 = vmatpush1.bf16.msra.mxu0 %v1178
        %1565 = vmatprep.subr.bf16.mxu0 0
        %1566 = vmatpush1.bf16.msra.mxu0 %v1179
        %1567 = vmatprep.subr.bf16.mxu0 0
        %1568 = vmatpush1.bf16.msra.mxu0 %v1180
        %1569 = vmatprep.subr.bf16.mxu0 0
        %1570 = vmatpush1.bf16.msra.mxu0 %v1181
        %1571 = vmatprep.subr.bf16.mxu0 0
        %1572 = vmatpush1.bf16.msra.mxu0 %v1182
        %1573 = vmatprep.subr.bf16.mxu0 0
        %1574 = vmatpush1.bf16.msra.mxu0 %v1183
        %1575 = vmatprep.subr.bf16.mxu0 0
        %1576 = vmatpush1.bf16.msra.mxu0 %v1184
        %1577 = vmatprep.mubr.bf16.mxu0 %v556
        %1578 = vmatmul.mubr.bf16.gmra.mrb[0].mxu0 %v555
        %v1579 = vpop.f32.mrb[0].mxu0
        %v1580 = vadd.f32 %v1540, %v1579
        %v1581 = vpop.f32.mrb[0].mxu0
        %v1582 = vpop.f32.mrb[0].mxu0
        %v1583 = vpop.f32.mrb[0].mxu0
        %1584 = vdwg.mxu0
        %1585 = vmatprep.subr.bf16.mxu0 0
        %1586 = vmatpush1.bf16.msra.mxu0 %v1185
        %1587 = vmatprep.subr.bf16.mxu0 0
        %1588 = vmatpush1.bf16.msra.mxu0 %v1186
        %1589 = vmatprep.subr.bf16.mxu0 0
        %1590 = vmatpush1.bf16.msra.mxu0 %v1187
        %1591 = vmatprep.subr.bf16.mxu0 0
        %1592 = vmatpush1.bf16.msra.mxu0 %v1188
        %1593 = vmatprep.subr.bf16.mxu0 0
        %1594 = vmatpush1.bf16.msra.mxu0 %v1189
        %1595 = vmatprep.subr.bf16.mxu0 0
        %1596 = vmatpush1.bf16.msra.mxu0 %v1190
        %1597 = vmatprep.subr.bf16.mxu0 0
        %1598 = vmatpush1.bf16.msra.mxu0 %v1191
        %1599 = vmatprep.subr.bf16.mxu0 0
        %1600 = vmatpush1.bf16.msra.mxu0 %v1192
        %1601 = vmatprep.subr.bf16.mxu0 0
        %1602 = vmatpush1.bf16.msra.mxu0 %v1193
        %1603 = vmatprep.subr.bf16.mxu0 0
        %1604 = vmatpush1.bf16.msra.mxu0 %v1194
        %1605 = vmatprep.subr.bf16.mxu0 0
        %1606 = vmatpush1.bf16.msra.mxu0 %v1195
        %1607 = vmatprep.subr.bf16.mxu0 0
        %1608 = vmatpush1.bf16.msra.mxu0 %v1196
        %1609 = vmatprep.subr.bf16.mxu0 0
        %1610 = vmatpush1.bf16.msra.mxu0 %v1197
        %1611 = vmatprep.subr.bf16.mxu0 0
        %1612 = vmatpush1.bf16.msra.mxu0 %v1198
        %1613 = vmatprep.subr.bf16.mxu0 0
        %1614 = vmatpush1.bf16.msra.mxu0 %v1199
        %1615 = vmatprep.subr.bf16.mxu0 0
        %1616 = vmatpush1.bf16.msra.mxu0 %v1200
        %1617 = vmatprep.mubr.bf16.mxu0 %v558
        %1618 = vmatmul.mubr.bf16.gmra.mrb[0].mxu0 %v557
        %v1619 = vpop.f32.mrb[0].mxu0
        %v1620 = vadd.f32 %v1580, %v1619
        %v1621 = vpop.f32.mrb[0].mxu0
        %v1622 = vpop.f32.mrb[0].mxu0
        %v1623 = vpop.f32.mrb[0].mxu0
        %1624 = vdwg.mxu0
        %1625 = vmatprep.subr.bf16.mxu0 0
        %1626 = vmatpush1.bf16.msra.mxu0 %v1201
        %1627 = vmatprep.subr.bf16.mxu0 0
        %1628 = vmatpush1.bf16.msra.mxu0 %v1202
        %1629 = vmatprep.subr.bf16.mxu0 0
        %1630 = vmatpush1.bf16.msra.mxu0 %v1203
        %1631 = vmatprep.subr.bf16.mxu0 0
        %1632 = vmatpush1.bf16.msra.mxu0 %v1204
        %1633 = vmatprep.subr.bf16.mxu0 0
        %1634 = vmatpush1.bf16.msra.mxu0 %v1205
        %1635 = vmatprep.subr.bf16.mxu0 0
        %1636 = vmatpush1.bf16.msra.mxu0 %v1206
        %1637 = vmatprep.subr.bf16.mxu0 0
        %1638 = vmatpush1.bf16.msra.mxu0 %v1207
        %1639 = vmatprep.subr.bf16.mxu0 0
        %1640 = vmatpush1.bf16.msra.mxu0 %v1208
        %1641 = vmatprep.subr.bf16.mxu0 0
        %1642 = vmatpush1.bf16.msra.mxu0 %v1209
        %1643 = vmatprep.subr.bf16.mxu0 0
        %1644 = vmatpush1.bf16.msra.mxu0 %v1210
        %1645 = vmatprep.subr.bf16.mxu0 0
        %1646 = vmatpush1.bf16.msra.mxu0 %v1211
        %1647 = vmatprep.subr.bf16.mxu0 0
        %1648 = vmatpush1.bf16.msra.mxu0 %v1212
        %1649 = vmatprep.subr.bf16.mxu0 0
        %1650 = vmatpush1.bf16.msra.mxu0 %v1213
        %1651 = vmatprep.subr.bf16.mxu0 0
        %1652 = vmatpush1.bf16.msra.mxu0 %v1214
        %1653 = vmatprep.subr.bf16.mxu0 0
        %1654 = vmatpush1.bf16.msra.mxu0 %v1215
        %1655 = vmatprep.subr.bf16.mxu0 0
        %1656 = vmatpush1.bf16.msra.mxu0 %v1216
        %1657 = vmatprep.mubr.bf16.mxu0 %v560
        %1658 = vmatmul.mubr.bf16.gmra.mrb[0].mxu0 %v559
        %v1659 = vpop.f32.mrb[0].mxu0
        %v1660 = vadd.f32 %v1620, %v1659
        %v1661 = vpop.f32.mrb[0].mxu0
        %v1662 = vpop.f32.mrb[0].mxu0
        %v1663 = vpop.f32.mrb[0].mxu0
        %1664 = vdwg.mxu0
        %v1665 = vrot.slane %v1660, 4
        %v1666 = vadd.f32 %v1660, %v1665
        %v1667 = vrot.slane %v1666, 2
        %v1668 = vadd.f32 %v1666, %v1667
        %v1669 = vrot.slane %v1668, 1
        %v1670 = vadd.f32 %v1668, %v1669
        %v1671 = vmul.f32 %v1670, 0.5
        %v1672 = vsub.f32 %v1660, %v1671
        %v1673 = vmul.f32 %v1672, %v1672
        %v1674 = vrot.slane %v1673, 4
        %v1675 = vadd.f32 %v1673, %v1674
        %v1676 = vrot.slane %v1675, 2
        %v1677 = vadd.f32 %v1675, %v1676
        %v1678 = vrot.slane %v1677, 1
        %v1679 = vadd.f32 %v1677, %v1678
        %v1680 = vmul.f32 %v1671, 6.0
        %v1681 = vmul.f32 %v1680, %v1671
        %v1682 = vsub.f32 %v1679, %v1681
        %v1683 = vmul.f32 %v1682, 0.5
        %v1684 = vmax.f32 %v1683, 0.0
        %v1685 = vadd.f32 %v1684, 1e-05
        %v1686 = vrsqrt.pop %v1685
        %v1687 = vld [vmem:[%s252] sm:$0x1]
        %v1688 = vmul.f32 %v1686, %v1687
        %v1689 = vlaneseq
        %v1690 = vshrl.u32 %v1689, 7
        %v1691 = vsub.s32 0, %v1690
        %v1692 = vrot.slane %v1688, %v1691
        %v1693 = vmul.f32 %v1672, %v1692
        %v1694 = vld [vmem:[%s255] sm:$0x1]
        %v1696 = vlaneseq
        %v1697 = vshrl.u32 %v1696, 7
        %v1698 = vsub.s32 0, %v1697
        %v1699 = vrot.slane %v1694, %v1698
        %v1701 = vadd.f32 %v1693, %v1699
        %v1702 = vmax.f32 %v1701, 0.0
        %1703 = vst [vmem:[%s249] sm:$0xff] %v1702
        %s1704 = sand.u32 %s129, 1
        %s1705 = scalar_lea.sflag [#allocation4], %s1704
        %s1706 = sand.u32 %s129, 1
        %s1707 = smul.addr %s1706, 8
        %s1708 = scalar_lea.vmem [#allocation7], %s1707
        // Predicated region
        $region45: #{tpu_custom_call.1} parent=35 // pred_check
          %p1709 = pneg %p139
        $region46: #{tpu_custom_call.1} parent=35 // pred_check_branch
          %1711 = sbr.rel (%p1709) target = $region48
        $region47: #{tpu_custom_call.1} parent=35 // pred_region
          %s1713 = ssub.s32 128, 128
          %1714 = vsyncadd %s1705, %s1713
          %s1715 = smul.addr %s22, 128
          %s1716 = scalar_lea.hbm %s4, %s1715
          %s1718 = sshll.u32 %s1708, 4
          %s1719 = int_to_ptr.vmem [resolvable:$true] %s1718
          %1721 = dma.vmem_to_hbm [thread:$0]  %s1719, 128, %s1716, %s1705
        $region48: #{tpu_custom_call.1} parent=35 // pred_fallthru
          _
      $region36: #{tpu_custom_call.1} parent=5 // pred_fallthru
        _
      %p1722 = scmp.le.s32.totalorder 2, %s17
      // Predicated region
      $region49: #{tpu_custom_call.1} parent=5 // pred_check
        %p1723 = pneg %p1722
      $region50: #{tpu_custom_call.1} parent=5 // pred_check_branch
        %1725 = sbr.rel (%p1723) target = $region52
      $region51: #{tpu_custom_call.1} parent=5 // pred_region
        %s1726 = ssub.s32 %s17, 2
        // Predicated region
        $region53: #{tpu_custom_call.1} parent=51 // pred_check
          %p1727 = pneg %p145
        $region54: #{tpu_custom_call.1} parent=51 // pred_check_branch
          %1729 = sbr.rel (%p1727) target = $region56
        $region55: #{tpu_custom_call.1} parent=51 // pred_region
          %s1730 = sand.u32 %s130, 1
          %s1731 = scalar_lea.sflag [#allocation4], %s1730
          %s1732 = sand.u32 %s130, 1
          %s1733 = smul.addr %s1732, 8
          %s1734 = scalar_lea.vmem [#allocation7], %s1733
          %1735 = dma.done %s1731, 128
        $region56: #{tpu_custom_call.1} parent=51 // pred_fallthru
          _
      $region52: #{tpu_custom_call.1} parent=5 // pred_fallthru
        _
    $region6: #{tpu_custom_call.1} parent=1 // loop_footer
      %s21 = sadd.s32 1, %s17
    $region7: #{tpu_custom_call.1} parent=1 // loop_footer_branch
      %16 = sbr.rel target = $region3
    $region8: #{tpu_custom_call.1} parent=1 // loop_exit
      _
    %1736 = vsyncpa [#allocation3], 1
    %s1737 = scalar_lea.sflag [#allocation3], 1
    %1738 = vsyncpa %s1737, 1
    %1739 = vsyncpa [#allocation6], 1
    %s1740 = scalar_lea.sflag [#allocation6], 1
    %1741 = vsyncpa %s1740, 1
    %1742 = vsyncpa [#allocation4], 1
    %s1743 = scalar_lea.sflag [#allocation4], 1
    %1744 = vsyncpa %s1743, 1

</llo_original>
